<compile_context>
chip_gen: v7x
topology: tpu7x:2x2x1
jax: 0.10.0
libtpu: 0.0.40
codegen_flags: <defaults>
</compile_context>

<pallas_src>
import functools

import jax
import jax.numpy as jnp
from jax.experimental import pallas as pl
from jax.experimental.pallas import tpu as pltpu


def _round_up(n, m):
    return ((n + m - 1) // m) * m


def _pad_to(a, shape):
    pads = [(0, t - s) for s, t in zip(a.shape, shape)]
    if all(p == (0, 0) for p in pads):
        return a
    return jnp.pad(a, pads)


def _mlp_kernel(x_ref, labels_ref,
                w1_ref, b1_ref, w2_ref, b2_ref, w3_ref, b3_ref,
                w4_ref, b4_ref, w5_ref, b5_ref,
                y_ref, loss_ref, *, valid_batch):
    """One batch tile: 5 dense layers (4 sigmoids) + per-tile squared-error sum."""
    tile_b = x_ref.shape[0]
    x = x_ref[...]                                            # (TB, Dp) f32

    def dense(h, w_ref, b_ref):
        return jnp.dot(h, w_ref[...],
                       preferred_element_type=jnp.float32) + b_ref[...]

    h = jax.nn.sigmoid(dense(x, w1_ref, b1_ref))              # (TB, Hp)
    h = jax.nn.sigmoid(dense(h, w2_ref, b2_ref))
    h = jax.nn.sigmoid(dense(h, w3_ref, b3_ref))
    h = jax.nn.sigmoid(dense(h, w4_ref, b4_ref))
    y = dense(h, w5_ref, b5_ref)                              # (TB, 128); col 0 is real
    y_ref[...] = y.astype(y_ref.dtype)                        # lane-dense, unmasked vst

    # Per-tile partial MSE numerator; mask out batch-padding rows in the tail tile.
    err = y[:, 0:1] - labels_ref[...]                         # (TB, 1)
    rows = (pl.program_id(0) * tile_b +
            jax.lax.broadcasted_iota(jnp.int32, (tile_b, 1), 0))
    sq = jnp.where(rows < valid_batch, err * err, 0.0)
    loss_ref[...] = jnp.sum(sq).reshape(1, 1, 1)              # this tile's own block


def mlp_net_forward(x, labels, params, *, tile_b=256):
    """Runs MLPNet.forward. Returns {'loss': scalar or None, 'y_pred': (B,)}."""
    x = x.astype(jnp.float32)
    B, D = x.shape
    w1, b1, w2, b2, w3, b3, w4, b4, w5, b5 = params
    H = w1.shape[1]

    LANE, SUB = 128, 8
    Dp = _round_up(D, LANE)
    Hp = _round_up(H, LANE)
    Op = LANE                                   # padded width of the final (H,1) layer

    tile_b = max(SUB, min(tile_b, _round_up(B, SUB)))
    Bp = _round_up(B, tile_b)
    n_tiles = Bp // tile_b

    # Zero-pad batch + feature dims (padding is mathematically exact, see header).
    x_p = _pad_to(x, (Bp, Dp))
    if labels is None:
        lbl_p = jnp.zeros((Bp, 1), jnp.float32)
    else:
        lbl_p = _pad_to(labels.reshape(B, 1).astype(jnp.float32), (Bp, 1))
    w1p, b1p = _pad_to(w1, (Dp, Hp)), _pad_to(b1.reshape(1, -1), (1, Hp))
    w2p, b2p = _pad_to(w2, (Hp, Hp)), _pad_to(b2.reshape(1, -1), (1, Hp))
    w3p, b3p = _pad_to(w3, (Hp, Hp)), _pad_to(b3.reshape(1, -1), (1, Hp))
    w4p, b4p = _pad_to(w4, (Hp, Hp)), _pad_to(b4.reshape(1, -1), (1, Hp))
    w5p, b5p = _pad_to(w5, (Hp, Op)), _pad_to(b5.reshape(1, -1), (1, Op))

    def full_spec(arr):
        # Parameter: same full block at every grid step (no re-DMA after first fetch).
        return pl.BlockSpec(arr.shape, lambda i: (0,) * arr.ndim)

    x_spec = pl.BlockSpec((tile_b, Dp), lambda i: (i, 0))
    lbl_spec = pl.BlockSpec((tile_b, 1), lambda i: (i, 0))
    y_spec = pl.BlockSpec((tile_b, Op), lambda i: (i, 0))
    loss_spec = pl.BlockSpec((1, 1, 1), lambda i: (i, 0, 0))   # per-tile partial sums

    kernel = functools.partial(_mlp_kernel, valid_batch=B)

    y_full, loss_parts = pl.pallas_call(
        kernel,
        out_shape=(
            jax.ShapeDtypeStruct((Bp, Op), jnp.float32),
            jax.ShapeDtypeStruct((n_tiles, 1, 1), jnp.float32),
        ),
        grid_spec=pltpu.PrefetchScalarGridSpec(
            num_scalar_prefetch=0,
            grid=(n_tiles,),
            in_specs=[x_spec, lbl_spec,
                      full_spec(w1p), full_spec(b1p),
                      full_spec(w2p), full_spec(b2p),
                      full_spec(w3p), full_spec(b3p),
                      full_spec(w4p), full_spec(b4p),
                      full_spec(w5p), full_spec(b5p)],
            out_specs=(y_spec, loss_spec),
        ),
        compiler_params=pltpu.CompilerParams(
            # No cross-step carry: the batch-tile axis can shard across both
            # TensorCores on v7x (megacore).
            dimension_semantics=("parallel",)),
    )(x_p, lbl_p, w1p, b1p, w2p, b2p, w3p, b3p, w4p, b4p, w5p, b5p)

    y_pred = y_full[:B, 0]                      # torch.squeeze(y_pred, -1)
    loss = None if labels is None else jnp.sum(loss_parts) / B
    return {"loss": loss, "y_pred": y_pred}


def init_params(key, input_dim, hidden_dim):
    """Deterministic init mimicking torch.nn.Linear's uniform(-1/sqrt(fan_in), ...)."""
    dims = [(input_dim, hidden_dim),
            (hidden_dim, hidden_dim),
            (hidden_dim, hidden_dim),
            (hidden_dim, hidden_dim),
            (hidden_dim, 1)]
    params = []
    for (fan_in, fan_out) in dims:
        key, kw, kb = jax.random.split(key, 3)
        bound = 1.0 / jnp.sqrt(fan_in)
        w = jax.random.uniform(kw, (fan_in, fan_out), jnp.float32, -bound, bound)
        b = jax.random.uniform(kb, (1, fan_out), jnp.float32, -bound, bound)
        params += [w, b]
    return tuple(params)


if __name__ == "__main__":
    key = jax.random.PRNGKey(0)
    # Batch deliberately not a multiple of the tile to exercise padding/masking.
    batch, input_dim, hidden_dim = 300, 16, 32

    k_x, k_lbl, k_p = jax.random.split(key, 3)
    x = jax.random.normal(k_x, (batch, input_dim), jnp.float32)
    labels = jax.random.normal(k_lbl, (batch,), jnp.float32)
    params = init_params(k_p, input_dim, hidden_dim)

    fwd = jax.jit(functools.partial(mlp_net_forward, tile_b=256))
    out = fwd(x, labels, params)
    jax.block_until_ready(out)

    # Pure-JAX reference check.
    def ref_forward(x, labels, params):
        w1, b1, w2, b2, w3, b3, w4, b4, w5, b5 = params
        h = jax.nn.sigmoid(x @ w1 + b1)
        h = jax.nn.sigmoid(h @ w2 + b2)
        h = jax.nn.sigmoid(h @ w3 + b3)
        h = jax.nn.sigmoid(h @ w4 + b4)
        y = (h @ w5 + b5).squeeze(-1)
        loss = jnp.mean((y - labels) ** 2)
        return loss, y

    ref_loss, ref_y = ref_forward(x, labels, params)
    assert out["y_pred"].shape == (batch,)
    assert jnp.allclose(out["y_pred"], ref_y, atol=1e-4, rtol=1e-4), \
        float(jnp.max(jnp.abs(out["y_pred"] - ref_y)))
    assert jnp.allclose(out["loss"], ref_loss, atol=1e-4, rtol=1e-4), \
        (float(out["loss"]), float(ref_loss))
    print("KERNEL_OK")
</pallas_src>

<mosaic_0001>
module attributes {stable_mosaic.version = 11 : i64} {
  func.func @_mlp_kernel(%arg0: i32, %arg1: memref<256x128xf32, #tpu.memory_space<vmem>>, %arg2: memref<256x1xf32, #tpu.memory_space<vmem>>, %arg3: memref<128x128xf32, #tpu.memory_space<vmem>>, %arg4: memref<1x128xf32, #tpu.memory_space<vmem>>, %arg5: memref<128x128xf32, #tpu.memory_space<vmem>>, %arg6: memref<1x128xf32, #tpu.memory_space<vmem>>, %arg7: memref<128x128xf32, #tpu.memory_space<vmem>>, %arg8: memref<1x128xf32, #tpu.memory_space<vmem>>, %arg9: memref<128x128xf32, #tpu.memory_space<vmem>>, %arg10: memref<1x128xf32, #tpu.memory_space<vmem>>, %arg11: memref<128x128xf32, #tpu.memory_space<vmem>>, %arg12: memref<1x128xf32, #tpu.memory_space<vmem>>, %arg13: memref<256x128xf32, #tpu.memory_space<vmem>>, %arg14: memref<1x1x1xf32, #tpu.memory_space<vmem>>) attributes {dimension_semantics = [#tpu.dimension_semantics<parallel>], iteration_bounds = array<i64: 2>, scalar_prefetch = 0 : i64, scratch_operands = 0 : i64, tpu.core_type = #tpu.core_type<tc>, window_params = [{transform_indices = @transform_0, window_bounds = array<i64: 256, 128>}, {transform_indices = @transform_1, window_bounds = array<i64: 256, 1>}, {pipeline_mode = #tpu.pipeline_mode<synchronous>, transform_indices = @transform_2, window_bounds = array<i64: 128, 128>}, {pipeline_mode = #tpu.pipeline_mode<synchronous>, transform_indices = @transform_3, window_bounds = array<i64: 1, 128>}, {pipeline_mode = #tpu.pipeline_mode<synchronous>, transform_indices = @transform_4, window_bounds = array<i64: 128, 128>}, {pipeline_mode = #tpu.pipeline_mode<synchronous>, transform_indices = @transform_5, window_bounds = array<i64: 1, 128>}, {pipeline_mode = #tpu.pipeline_mode<synchronous>, transform_indices = @transform_6, window_bounds = array<i64: 128, 128>}, {pipeline_mode = #tpu.pipeline_mode<synchronous>, transform_indices = @transform_7, window_bounds = array<i64: 1, 128>}, {pipeline_mode = #tpu.pipeline_mode<synchronous>, transform_indices = @transform_8, window_bounds = array<i64: 128, 128>}, {pipeline_mode = #tpu.pipeline_mode<synchronous>, transform_indices = @transform_9, window_bounds = array<i64: 1, 128>}, {pipeline_mode = #tpu.pipeline_mode<synchronous>, transform_indices = @transform_10, window_bounds = array<i64: 128, 128>}, {pipeline_mode = #tpu.pipeline_mode<synchronous>, transform_indices = @transform_11, window_bounds = array<i64: 1, 128>}, {transform_indices = @transform_12, window_bounds = array<i64: 256, 128>}, {transform_indices = @transform_13, window_bounds = array<i64: 1, 1, 1>}]} {
    %c0 = arith.constant 0 : index
    %c0_0 = arith.constant 0 : index
    %0 = vector.load %arg1[%c0, %c0_0] : memref<256x128xf32, #tpu.memory_space<vmem>>, vector<256x128xf32>
    %c0_1 = arith.constant 0 : index
    %c0_2 = arith.constant 0 : index
    %1 = vector.load %arg3[%c0_1, %c0_2] : memref<128x128xf32, #tpu.memory_space<vmem>>, vector<128x128xf32>
    %cst = arith.constant dense<0.000000e+00> : vector<256x128xf32>
    %2 = tpu.matmul %0, %1, %cst {dimension_numbers = #tpu.dot_dimension_numbers<[1], [0], [0], [1], [0, 0, 1, 1], [], []>} : vector<256x128xf32>, vector<128x128xf32>, vector<256x128xf32> -> vector<256x128xf32>
    %c0_3 = arith.constant 0 : index
    %c0_4 = arith.constant 0 : index
    %3 = vector.load %arg4[%c0_3, %c0_4] : memref<1x128xf32, #tpu.memory_space<vmem>>, vector<1x128xf32>
    %4 = vector.broadcast %3 : vector<1x128xf32> to vector<256x128xf32>
    %5 = arith.addf %2, %4 : vector<256x128xf32>
    %6 = arith.negf %5 : vector<256x128xf32>
    %7 = math.exp %6 : vector<256x128xf32>
    %cst_5 = arith.constant 1.000000e+00 : f32
    %8 = vector.broadcast %cst_5 : f32 to vector<256x128xf32>
    %9 = arith.addf %8, %7 : vector<256x128xf32>
    %10 = arith.divf %8, %9 : vector<256x128xf32>
    %c0_6 = arith.constant 0 : index
    %c0_7 = arith.constant 0 : index
    %11 = vector.load %arg5[%c0_6, %c0_7] : memref<128x128xf32, #tpu.memory_space<vmem>>, vector<128x128xf32>
    %cst_8 = arith.constant dense<0.000000e+00> : vector<256x128xf32>
    %12 = tpu.matmul %10, %11, %cst_8 {dimension_numbers = #tpu.dot_dimension_numbers<[1], [0], [0], [1], [0, 0, 1, 1], [], []>} : vector<256x128xf32>, vector<128x128xf32>, vector<256x128xf32> -> vector<256x128xf32>
    %c0_9 = arith.constant 0 : index
    %c0_10 = arith.constant 0 : index
    %13 = vector.load %arg6[%c0_9, %c0_10] : memref<1x128xf32, #tpu.memory_space<vmem>>, vector<1x128xf32>
    %14 = vector.broadcast %13 : vector<1x128xf32> to vector<256x128xf32>
    %15 = arith.addf %12, %14 : vector<256x128xf32>
    %16 = arith.negf %15 : vector<256x128xf32>
    %17 = math.exp %16 : vector<256x128xf32>
    %cst_11 = arith.constant 1.000000e+00 : f32
    %18 = vector.broadcast %cst_11 : f32 to vector<256x128xf32>
    %19 = arith.addf %18, %17 : vector<256x128xf32>
    %20 = arith.divf %18, %19 : vector<256x128xf32>
    %c0_12 = arith.constant 0 : index
    %c0_13 = arith.constant 0 : index
    %21 = vector.load %arg7[%c0_12, %c0_13] : memref<128x128xf32, #tpu.memory_space<vmem>>, vector<128x128xf32>
    %cst_14 = arith.constant dense<0.000000e+00> : vector<256x128xf32>
    %22 = tpu.matmul %20, %21, %cst_14 {dimension_numbers = #tpu.dot_dimension_numbers<[1], [0], [0], [1], [0, 0, 1, 1], [], []>} : vector<256x128xf32>, vector<128x128xf32>, vector<256x128xf32> -> vector<256x128xf32>
    %c0_15 = arith.constant 0 : index
    %c0_16 = arith.constant 0 : index
    %23 = vector.load %arg8[%c0_15, %c0_16] : memref<1x128xf32, #tpu.memory_space<vmem>>, vector<1x128xf32>
    %24 = vector.broadcast %23 : vector<1x128xf32> to vector<256x128xf32>
    %25 = arith.addf %22, %24 : vector<256x128xf32>
    %26 = arith.negf %25 : vector<256x128xf32>
    %27 = math.exp %26 : vector<256x128xf32>
    %cst_17 = arith.constant 1.000000e+00 : f32
    %28 = vector.broadcast %cst_17 : f32 to vector<256x128xf32>
    %29 = arith.addf %28, %27 : vector<256x128xf32>
    %30 = arith.divf %28, %29 : vector<256x128xf32>
    %c0_18 = arith.constant 0 : index
    %c0_19 = arith.constant 0 : index
    %31 = vector.load %arg9[%c0_18, %c0_19] : memref<128x128xf32, #tpu.memory_space<vmem>>, vector<128x128xf32>
    %cst_20 = arith.constant dense<0.000000e+00> : vector<256x128xf32>
    %32 = tpu.matmul %30, %31, %cst_20 {dimension_numbers = #tpu.dot_dimension_numbers<[1], [0], [0], [1], [0, 0, 1, 1], [], []>} : vector<256x128xf32>, vector<128x128xf32>, vector<256x128xf32> -> vector<256x128xf32>
    %c0_21 = arith.constant 0 : index
    %c0_22 = arith.constant 0 : index
    %33 = vector.load %arg10[%c0_21, %c0_22] : memref<1x128xf32, #tpu.memory_space<vmem>>, vector<1x128xf32>
    %34 = vector.broadcast %33 : vector<1x128xf32> to vector<256x128xf32>
    %35 = arith.addf %32, %34 : vector<256x128xf32>
    %36 = arith.negf %35 : vector<256x128xf32>
    %37 = math.exp %36 : vector<256x128xf32>
    %cst_23 = arith.constant 1.000000e+00 : f32
    %38 = vector.broadcast %cst_23 : f32 to vector<256x128xf32>
    %39 = arith.addf %38, %37 : vector<256x128xf32>
    %40 = arith.divf %38, %39 : vector<256x128xf32>
    %c0_24 = arith.constant 0 : index
    %c0_25 = arith.constant 0 : index
    %41 = vector.load %arg11[%c0_24, %c0_25] : memref<128x128xf32, #tpu.memory_space<vmem>>, vector<128x128xf32>
    %cst_26 = arith.constant dense<0.000000e+00> : vector<256x128xf32>
    %42 = tpu.matmul %40, %41, %cst_26 {dimension_numbers = #tpu.dot_dimension_numbers<[1], [0], [0], [1], [0, 0, 1, 1], [], []>} : vector<256x128xf32>, vector<128x128xf32>, vector<256x128xf32> -> vector<256x128xf32>
    %c0_27 = arith.constant 0 : index
    %c0_28 = arith.constant 0 : index
    %43 = vector.load %arg12[%c0_27, %c0_28] : memref<1x128xf32, #tpu.memory_space<vmem>>, vector<1x128xf32>
    %44 = vector.broadcast %43 : vector<1x128xf32> to vector<256x128xf32>
    %45 = arith.addf %42, %44 : vector<256x128xf32>
    %c0_29 = arith.constant 0 : index
    %c0_30 = arith.constant 0 : index
    %46 = vector.load %arg13[%c0_29, %c0_30] : memref<256x128xf32, #tpu.memory_space<vmem>>, vector<256x128xf32>
    tpu.vector_store %arg13[%c0_29, %c0_30], %45 {strides = array<i32>} : memref<256x128xf32, #tpu.memory_space<vmem>>, vector<256x128xf32>,
    %47 = vector.extract_strided_slice %45 {offsets = [0, 0], sizes = [256, 1], strides = [1, 1]} : vector<256x128xf32> to vector<256x1xf32>
    %c0_31 = arith.constant 0 : index
    %c0_32 = arith.constant 0 : index
    %48 = vector.load %arg2[%c0_31, %c0_32] : memref<256x1xf32, #tpu.memory_space<vmem>>, vector<256x1xf32>
    %49 = arith.subf %47, %48 : vector<256x1xf32>
    %c256_i32 = arith.constant 256 : i32
    %50 = arith.muli %arg0, %c256_i32 : i32
    %51 = tpu.iota {dimensions = array<i32: 0>} : vector<256x1xi32>
    %52 = vector.broadcast %50 : i32 to vector<256x1xi32>
    %53 = arith.addi %52, %51 : vector<256x1xi32>
    %c300_i32 = arith.constant 300 : i32
    %54 = vector.broadcast %c300_i32 : i32 to vector<256x1xi32>
    %55 = arith.cmpi slt, %53, %54 : vector<256x1xi32>
    %56 = arith.mulf %49, %49 : vector<256x1xf32>
    %cst_33 = arith.constant 0.000000e+00 : f32
    %57 = vector.broadcast %cst_33 : f32 to vector<256x1xf32>
    %58 = arith.select %55, %56, %57 : vector<256x1xi1>, vector<256x1xf32>
    %59 = vector.shape_cast %58 : vector<256x1xf32> to vector<1x256x1xf32>
    %cst_34 = arith.constant dense<0.000000e+00> : vector<1xf32>
    %60 = vector.multi_reduction <add>, %59, %cst_34 [1, 2] : vector<1x256x1xf32> to vector<1xf32>
    %61 = vector.shape_cast %60 : vector<1xf32> to vector<1x1x1xf32>
    %62 = vector.extract %61[0, 0, 0] : f32 from vector<1x1x1xf32>
    %63 = vector.broadcast %62 : f32 to vector<1x1x1xf32>
    %c0_35 = arith.constant 0 : index
    %c0_36 = arith.constant 0 : index
    %c0_37 = arith.constant 0 : index
    %64 = vector.load %arg14[%c0_35, %c0_36, %c0_37] : memref<1x1x1xf32, #tpu.memory_space<vmem>>, vector<1x1x1xf32>
    tpu.vector_store %arg14[%c0_35, %c0_36, %c0_37], %63 {strides = array<i32>} : memref<1x1x1xf32, #tpu.memory_space<vmem>>, vector<1x1x1xf32>,
    return
  }
  func.func @transform_0(%arg0: i32) -> (i32, i32) {
    %c0_i32 = arith.constant 0 : i32
    %c0_i32_0 = arith.constant 0 : i32
    return %arg0, %c0_i32 : i32, i32
  }
  func.func @transform_1(%arg0: i32) -> (i32, i32) {
    %c0_i32 = arith.constant 0 : i32
    %c0_i32_0 = arith.constant 0 : i32
    return %arg0, %c0_i32 : i32, i32
  }
  func.func @transform_2(%arg0: i32) -> (i32, i32) {
    %c0_i32 = arith.constant 0 : i32
    %c0_i32_0 = arith.constant 0 : i32
    %c0_i32_1 = arith.constant 0 : i32
    return %c0_i32, %c0_i32_0 : i32, i32
  }
  func.func @transform_3(%arg0: i32) -> (i32, i32) {
    %c0_i32 = arith.constant 0 : i32
    %c0_i32_0 = arith.constant 0 : i32
    %c0_i32_1 = arith.constant 0 : i32
    return %c0_i32, %c0_i32_0 : i32, i32
  }
  func.func @transform_4(%arg0: i32) -> (i32, i32) {
    %c0_i32 = arith.constant 0 : i32
    %c0_i32_0 = arith.constant 0 : i32
    %c0_i32_1 = arith.constant 0 : i32
    return %c0_i32, %c0_i32_0 : i32, i32
  }
  func.func @transform_5(%arg0: i32) -> (i32, i32) {
    %c0_i32 = arith.constant 0 : i32
    %c0_i32_0 = arith.constant 0 : i32
    %c0_i32_1 = arith.constant 0 : i32
    return %c0_i32, %c0_i32_0 : i32, i32
  }
  func.func @transform_6(%arg0: i32) -> (i32, i32) {
    %c0_i32 = arith.constant 0 : i32
    %c0_i32_0 = arith.constant 0 : i32
    %c0_i32_1 = arith.constant 0 : i32
    return %c0_i32, %c0_i32_0 : i32, i32
  }
  func.func @transform_7(%arg0: i32) -> (i32, i32) {
    %c0_i32 = arith.constant 0 : i32
    %c0_i32_0 = arith.constant 0 : i32
    %c0_i32_1 = arith.constant 0 : i32
    return %c0_i32, %c0_i32_0 : i32, i32
  }
  func.func @transform_8(%arg0: i32) -> (i32, i32) {
    %c0_i32 = arith.constant 0 : i32
    %c0_i32_0 = arith.constant 0 : i32
    %c0_i32_1 = arith.constant 0 : i32
    return %c0_i32, %c0_i32_0 : i32, i32
  }
  func.func @transform_9(%arg0: i32) -> (i32, i32) {
    %c0_i32 = arith.constant 0 : i32
    %c0_i32_0 = arith.constant 0 : i32
    %c0_i32_1 = arith.constant 0 : i32
    return %c0_i32, %c0_i32_0 : i32, i32
  }
  func.func @transform_10(%arg0: i32) -> (i32, i32) {
    %c0_i32 = arith.constant 0 : i32
    %c0_i32_0 = arith.constant 0 : i32
    %c0_i32_1 = arith.constant 0 : i32
    return %c0_i32, %c0_i32_0 : i32, i32
  }
  func.func @transform_11(%arg0: i32) -> (i32, i32) {
    %c0_i32 = arith.constant 0 : i32
    %c0_i32_0 = arith.constant 0 : i32
    %c0_i32_1 = arith.constant 0 : i32
    return %c0_i32, %c0_i32_0 : i32, i32
  }
  func.func @transform_12(%arg0: i32) -> (i32, i32) {
    %c0_i32 = arith.constant 0 : i32
    %c0_i32_0 = arith.constant 0 : i32
    return %arg0, %c0_i32 : i32, i32
  }
  func.func @transform_13(%arg0: i32) -> (i32, i32, i32) {
    %c0_i32 = arith.constant 0 : i32
    %c0_i32_0 = arith.constant 0 : i32
    %c0_i32_1 = arith.constant 0 : i32
    return %arg0, %c0_i32, %c0_i32_0 : i32, i32, i32
  }
}

</mosaic_0001>

<llo_original>
// kernel: mlp_net_forward.1
$region0: #{mlp_net_forward.1}
  #allocation0 [shape = 'u32[]', space=smem, size = 0x4, offset = 0x4, fixed_abs, tag = 'smem constant byte address 0x4 - core index']
  #allocation1 [shape = 'u32[144,128]{1,0:T(1,128)}', space=vmem, size = 0x12000, scoped, tag = 'internal scratch']
  %s0 = inlined_call_operand.vmem [shape: f32[512,128], index: 0, kind: input, shape index: {}]
  %s1 = inlined_call_operand.vmem [shape: f32[512,1], index: 1, kind: input, shape index: {}]
  %s2 = inlined_call_operand.vmem [shape: f32[128,128], index: 2, kind: input, shape index: {}]
  %s3 = inlined_call_operand.vmem [shape: f32[1,128], index: 3, kind: input, shape index: {}]
  %s4 = inlined_call_operand.vmem [shape: f32[128,128], index: 4, kind: input, shape index: {}]
  %s5 = inlined_call_operand.vmem [shape: f32[1,128], index: 5, kind: input, shape index: {}]
  %s6 = inlined_call_operand.vmem [shape: f32[128,128], index: 6, kind: input, shape index: {}]
  %s7 = inlined_call_operand.vmem [shape: f32[1,128], index: 7, kind: input, shape index: {}]
  %s8 = inlined_call_operand.vmem [shape: f32[128,128], index: 8, kind: input, shape index: {}]
  %s9 = inlined_call_operand.vmem [shape: f32[1,128], index: 9, kind: input, shape index: {}]
  %s10 = inlined_call_operand.vmem [shape: f32[128,128], index: 10, kind: input, shape index: {}]
  %s11 = inlined_call_operand.vmem [shape: f32[1,128], index: 11, kind: input, shape index: {}]
  %s12 = inlined_call_operand.vmem [shape: f32[512,128], index: 12, kind: output, shape index: {0}]
  %s13 = inlined_call_operand.vmem [shape: f32[2,1,1], index: 13, kind: output, shape index: {1}]
  %14 = xla_tuple %s12, %s13
  %s15 = sld [smem:[#allocation0]]
  $region89: #{mlp_net_forward.1} parent=0
    _
  %s17 = ssub.s32 1, %s15
  %s18 = scalar_select 0, %s17, %s15
  loop: start=0, step=1, limit=4
  $region2: #{mlp_net_forward.1} parent=0 // loop_pre_header
    _
  $region3: #{mlp_net_forward.1} parent=0 // loop_header
    %s20 = sphi 0, %s24
    %p21 = scmp.ge.s32.totalorder %s20, 4
    %s30 = sphi 0, %s32
    %s33 = sphi 0, %s30
    %s34 = sphi 0, %s33
    %s50 = sphi 0, %s34
    %s56 = sphi 0, %s58
    %s59 = sphi 0, %s56
    %s60 = sphi 0, %s59
    %s76 = sphi 0, %s60
    %s80 = sphi 0, %s80
    %s82 = sphi 0, %s80
    %s83 = sphi 0, %s82
    %s97 = sphi 0, %s83
    %s101 = sphi 0, %s101
    %s103 = sphi 0, %s101
    %s104 = sphi 0, %s103
    %s118 = sphi 0, %s104
    %s122 = sphi 0, %s122
    %s124 = sphi 0, %s122
    %s125 = sphi 0, %s124
    %s139 = sphi 0, %s125
    %s143 = sphi 0, %s143
    %s145 = sphi 0, %s143
    %s146 = sphi 0, %s145
    %s160 = sphi 0, %s146
    %s164 = sphi 0, %s164
    %s166 = sphi 0, %s164
    %s167 = sphi 0, %s166
    %s181 = sphi 0, %s167
    %s185 = sphi 0, %s185
    %s187 = sphi 0, %s185
    %s188 = sphi 0, %s187
    %s202 = sphi 0, %s188
    %s206 = sphi 0, %s206
    %s208 = sphi 0, %s206
    %s209 = sphi 0, %s208
    %s223 = sphi 0, %s209
    %s227 = sphi 0, %s227
    %s229 = sphi 0, %s227
    %s230 = sphi 0, %s229
    %s244 = sphi 0, %s230
    %s248 = sphi 0, %s248
    %s250 = sphi 0, %s248
    %s251 = sphi 0, %s250
    %s265 = sphi 0, %s251
    %s269 = sphi 0, %s269
    %s271 = sphi 0, %s269
    %s272 = sphi 0, %s271
    %s286 = sphi 0, %s272
    %s292 = sphi 0, %s294
    %s295 = sphi 0, %s292
    %s296 = sphi 0, %s295
    %s312 = sphi 0, %s296
    %s318 = sphi 0, %s320
    %s321 = sphi 0, %s318
    %s322 = sphi 0, %s321
    %s338 = sphi 0, %s322
  $region4: #{mlp_net_forward.1} parent=0 // loop_header_branch
    %23 = sbr.rel (%p21) target = $region8
  $region5: #{mlp_net_forward.1} parent=0 // loop_body
    %s25 = ssub.s32 %s20, 1
    %s26 = ssub.s32 %s20, 2
    %s27 = sadd.s32 %s20, 1
    %s28 = ssub.s32 %s20, %s27
    %p29 = scmp.eq.s32.totalorder %s28, 0
    %s31 = sadd.s32 %s30, 1
    %s32 = scalar_select %p29, %s30, %s31
    %p35 = pneg %p29
    %p36 = scmp.eq.s32.totalorder %s20, 1
    %p37 = por %p35, %p36
    %p38 = scmp.ne.s32.totalorder %s30, %s33
    %p39 = scmp.eq.s32.totalorder %s20, 0
    %p40 = por %p38, %p39
    %p41 = scmp.ne.s32.totalorder %s30, %s33
    %p42 = scmp.eq.s32.totalorder %s25, 1
    %p43 = por %p41, %p42
    %p44 = scmp.ne.s32.totalorder %s33, %s34
    %p45 = scmp.eq.s32.totalorder %s25, 0
    %p46 = por %p44, %p45
    %p47 = scmp.ne.s32.totalorder %s33, %s34
    %p48 = scmp.eq.s32.totalorder %s26, 1
    %p49 = por %p47, %p48
    %p51 = scmp.ne.s32.totalorder %s34, %s50
    %p52 = scmp.eq.s32.totalorder %s26, 0
    %p53 = por %p51, %p52
    %s54 = ssub.s32 %s20, %s27
    %p55 = scmp.eq.s32.totalorder %s54, 0
    %s57 = sadd.s32 %s56, 1
    %s58 = scalar_select %p55, %s56, %s57
    %p61 = pneg %p55
    %p62 = scmp.eq.s32.totalorder %s20, 1
    %p63 = por %p61, %p62
    %p64 = scmp.ne.s32.totalorder %s56, %s59
    %p65 = scmp.eq.s32.totalorder %s20, 0
    %p66 = por %p64, %p65
    %p67 = scmp.ne.s32.totalorder %s56, %s59
    %p68 = scmp.eq.s32.totalorder %s25, 1
    %p69 = por %p67, %p68
    %p70 = scmp.ne.s32.totalorder %s59, %s60
    %p71 = scmp.eq.s32.totalorder %s25, 0
    %p72 = por %p70, %p71
    %p73 = scmp.ne.s32.totalorder %s59, %s60
    %p74 = scmp.eq.s32.totalorder %s26, 1
    %p75 = por %p73, %p74
    %p77 = scmp.ne.s32.totalorder %s60, %s76
    %p78 = scmp.eq.s32.totalorder %s26, 0
    %p79 = por %p77, %p78
    %s81 = sadd.s32 %s80, 1
    %p84 = scmp.eq.s32.totalorder %s20, 1
    %p85 = scmp.ne.s32.totalorder %s80, %s82
    %p86 = scmp.eq.s32.totalorder %s20, 0
    %p87 = por %p85, %p86
    %p88 = scmp.ne.s32.totalorder %s80, %s82
    %p89 = scmp.eq.s32.totalorder %s25, 1
    %p90 = por %p88, %p89
    %p91 = scmp.ne.s32.totalorder %s82, %s83
    %p92 = scmp.eq.s32.totalorder %s25, 0
    %p93 = por %p91, %p92
    %p94 = scmp.ne.s32.totalorder %s82, %s83
    %p95 = scmp.eq.s32.totalorder %s26, 1
    %p96 = por %p94, %p95
    %p98 = scmp.ne.s32.totalorder %s83, %s97
    %p99 = scmp.eq.s32.totalorder %s26, 0
    %p100 = por %p98, %p99
    %s102 = sadd.s32 %s101, 1
    %p105 = scmp.eq.s32.totalorder %s20, 1
    %p106 = scmp.ne.s32.totalorder %s101, %s103
    %p107 = scmp.eq.s32.totalorder %s20, 0
    %p108 = por %p106, %p107
    %p109 = scmp.ne.s32.totalorder %s101, %s103
    %p110 = scmp.eq.s32.totalorder %s25, 1
    %p111 = por %p109, %p110
    %p112 = scmp.ne.s32.totalorder %s103, %s104
    %p113 = scmp.eq.s32.totalorder %s25, 0
    %p114 = por %p112, %p113
    %p115 = scmp.ne.s32.totalorder %s103, %s104
    %p116 = scmp.eq.s32.totalorder %s26, 1
    %p117 = por %p115, %p116
    %p119 = scmp.ne.s32.totalorder %s104, %s118
    %p120 = scmp.eq.s32.totalorder %s26, 0
    %p121 = por %p119, %p120
    %s123 = sadd.s32 %s122, 1
    %p126 = scmp.eq.s32.totalorder %s20, 1
    %p127 = scmp.ne.s32.totalorder %s122, %s124
    %p128 = scmp.eq.s32.totalorder %s20, 0
    %p129 = por %p127, %p128
    %p130 = scmp.ne.s32.totalorder %s122, %s124
    %p131 = scmp.eq.s32.totalorder %s25, 1
    %p132 = por %p130, %p131
    %p133 = scmp.ne.s32.totalorder %s124, %s125
    %p134 = scmp.eq.s32.totalorder %s25, 0
    %p135 = por %p133, %p134
    %p136 = scmp.ne.s32.totalorder %s124, %s125
    %p137 = scmp.eq.s32.totalorder %s26, 1
    %p138 = por %p136, %p137
    %p140 = scmp.ne.s32.totalorder %s125, %s139
    %p141 = scmp.eq.s32.totalorder %s26, 0
    %p142 = por %p140, %p141
    %s144 = sadd.s32 %s143, 1
    %p147 = scmp.eq.s32.totalorder %s20, 1
    %p148 = scmp.ne.s32.totalorder %s143, %s145
    %p149 = scmp.eq.s32.totalorder %s20, 0
    %p150 = por %p148, %p149
    %p151 = scmp.ne.s32.totalorder %s143, %s145
    %p152 = scmp.eq.s32.totalorder %s25, 1
    %p153 = por %p151, %p152
    %p154 = scmp.ne.s32.totalorder %s145, %s146
    %p155 = scmp.eq.s32.totalorder %s25, 0
    %p156 = por %p154, %p155
    %p157 = scmp.ne.s32.totalorder %s145, %s146
    %p158 = scmp.eq.s32.totalorder %s26, 1
    %p159 = por %p157, %p158
    %p161 = scmp.ne.s32.totalorder %s146, %s160
    %p162 = scmp.eq.s32.totalorder %s26, 0
    %p163 = por %p161, %p162
    %s165 = sadd.s32 %s164, 1
    %p168 = scmp.eq.s32.totalorder %s20, 1
    %p169 = scmp.ne.s32.totalorder %s164, %s166
    %p170 = scmp.eq.s32.totalorder %s20, 0
    %p171 = por %p169, %p170
    %p172 = scmp.ne.s32.totalorder %s164, %s166
    %p173 = scmp.eq.s32.totalorder %s25, 1
    %p174 = por %p172, %p173
    %p175 = scmp.ne.s32.totalorder %s166, %s167
    %p176 = scmp.eq.s32.totalorder %s25, 0
    %p177 = por %p175, %p176
    %p178 = scmp.ne.s32.totalorder %s166, %s167
    %p179 = scmp.eq.s32.totalorder %s26, 1
    %p180 = por %p178, %p179
    %p182 = scmp.ne.s32.totalorder %s167, %s181
    %p183 = scmp.eq.s32.totalorder %s26, 0
    %p184 = por %p182, %p183
    %s186 = sadd.s32 %s185, 1
    %p189 = scmp.eq.s32.totalorder %s20, 1
    %p190 = scmp.ne.s32.totalorder %s185, %s187
    %p191 = scmp.eq.s32.totalorder %s20, 0
    %p192 = por %p190, %p191
    %p193 = scmp.ne.s32.totalorder %s185, %s187
    %p194 = scmp.eq.s32.totalorder %s25, 1
    %p195 = por %p193, %p194
    %p196 = scmp.ne.s32.totalorder %s187, %s188
    %p197 = scmp.eq.s32.totalorder %s25, 0
    %p198 = por %p196, %p197
    %p199 = scmp.ne.s32.totalorder %s187, %s188
    %p200 = scmp.eq.s32.totalorder %s26, 1
    %p201 = por %p199, %p200
    %p203 = scmp.ne.s32.totalorder %s188, %s202
    %p204 = scmp.eq.s32.totalorder %s26, 0
    %p205 = por %p203, %p204
    %s207 = sadd.s32 %s206, 1
    %p210 = scmp.eq.s32.totalorder %s20, 1
    %p211 = scmp.ne.s32.totalorder %s206, %s208
    %p212 = scmp.eq.s32.totalorder %s20, 0
    %p213 = por %p211, %p212
    %p214 = scmp.ne.s32.totalorder %s206, %s208
    %p215 = scmp.eq.s32.totalorder %s25, 1
    %p216 = por %p214, %p215
    %p217 = scmp.ne.s32.totalorder %s208, %s209
    %p218 = scmp.eq.s32.totalorder %s25, 0
    %p219 = por %p217, %p218
    %p220 = scmp.ne.s32.totalorder %s208, %s209
    %p221 = scmp.eq.s32.totalorder %s26, 1
    %p222 = por %p220, %p221
    %p224 = scmp.ne.s32.totalorder %s209, %s223
    %p225 = scmp.eq.s32.totalorder %s26, 0
    %p226 = por %p224, %p225
    %s228 = sadd.s32 %s227, 1
    %p231 = scmp.eq.s32.totalorder %s20, 1
    %p232 = scmp.ne.s32.totalorder %s227, %s229
    %p233 = scmp.eq.s32.totalorder %s20, 0
    %p234 = por %p232, %p233
    %p235 = scmp.ne.s32.totalorder %s227, %s229
    %p236 = scmp.eq.s32.totalorder %s25, 1
    %p237 = por %p235, %p236
    %p238 = scmp.ne.s32.totalorder %s229, %s230
    %p239 = scmp.eq.s32.totalorder %s25, 0
    %p240 = por %p238, %p239
    %p241 = scmp.ne.s32.totalorder %s229, %s230
    %p242 = scmp.eq.s32.totalorder %s26, 1
    %p243 = por %p241, %p242
    %p245 = scmp.ne.s32.totalorder %s230, %s244
    %p246 = scmp.eq.s32.totalorder %s26, 0
    %p247 = por %p245, %p246
    %s249 = sadd.s32 %s248, 1
    %p252 = scmp.eq.s32.totalorder %s20, 1
    %p253 = scmp.ne.s32.totalorder %s248, %s250
    %p254 = scmp.eq.s32.totalorder %s20, 0
    %p255 = por %p253, %p254
    %p256 = scmp.ne.s32.totalorder %s248, %s250
    %p257 = scmp.eq.s32.totalorder %s25, 1
    %p258 = por %p256, %p257
    %p259 = scmp.ne.s32.totalorder %s250, %s251
    %p260 = scmp.eq.s32.totalorder %s25, 0
    %p261 = por %p259, %p260
    %p262 = scmp.ne.s32.totalorder %s250, %s251
    %p263 = scmp.eq.s32.totalorder %s26, 1
    %p264 = por %p262, %p263
    %p266 = scmp.ne.s32.totalorder %s251, %s265
    %p267 = scmp.eq.s32.totalorder %s26, 0
    %p268 = por %p266, %p267
    %s270 = sadd.s32 %s269, 1
    %p273 = scmp.eq.s32.totalorder %s20, 1
    %p274 = scmp.ne.s32.totalorder %s269, %s271
    %p275 = scmp.eq.s32.totalorder %s20, 0
    %p276 = por %p274, %p275
    %p277 = scmp.ne.s32.totalorder %s269, %s271
    %p278 = scmp.eq.s32.totalorder %s25, 1
    %p279 = por %p277, %p278
    %p280 = scmp.ne.s32.totalorder %s271, %s272
    %p281 = scmp.eq.s32.totalorder %s25, 0
    %p282 = por %p280, %p281
    %p283 = scmp.ne.s32.totalorder %s271, %s272
    %p284 = scmp.eq.s32.totalorder %s26, 1
    %p285 = por %p283, %p284
    %p287 = scmp.ne.s32.totalorder %s272, %s286
    %p288 = scmp.eq.s32.totalorder %s26, 0
    %p289 = por %p287, %p288
    %s290 = ssub.s32 %s20, %s27
    %p291 = scmp.eq.s32.totalorder %s290, 0
    %s293 = sadd.s32 %s292, 1
    %s294 = scalar_select %p291, %s292, %s293
    %p297 = pneg %p291
    %p298 = scmp.eq.s32.totalorder %s20, 1
    %p299 = por %p297, %p298
    %p300 = scmp.ne.s32.totalorder %s292, %s295
    %p301 = scmp.eq.s32.totalorder %s20, 0
    %p302 = por %p300, %p301
    %p303 = scmp.ne.s32.totalorder %s292, %s295
    %p304 = scmp.eq.s32.totalorder %s25, 1
    %p305 = por %p303, %p304
    %p306 = scmp.ne.s32.totalorder %s295, %s296
    %p307 = scmp.eq.s32.totalorder %s25, 0
    %p308 = por %p306, %p307
    %p309 = scmp.ne.s32.totalorder %s295, %s296
    %p310 = scmp.eq.s32.totalorder %s26, 1
    %p311 = por %p309, %p310
    %p313 = scmp.ne.s32.totalorder %s296, %s312
    %p314 = scmp.eq.s32.totalorder %s26, 0
    %p315 = por %p313, %p314
    %s316 = ssub.s32 %s20, %s27
    %p317 = scmp.eq.s32.totalorder %s316, 0
    %s319 = sadd.s32 %s318, 1
    %s320 = scalar_select %p317, %s318, %s319
    %p323 = pneg %p317
    %p324 = scmp.eq.s32.totalorder %s20, 1
    %p325 = por %p323, %p324
    %p326 = scmp.ne.s32.totalorder %s318, %s321
    %p327 = scmp.eq.s32.totalorder %s20, 0
    %p328 = por %p326, %p327
    %p329 = scmp.ne.s32.totalorder %s318, %s321
    %p330 = scmp.eq.s32.totalorder %s25, 1
    %p331 = por %p329, %p330
    %p332 = scmp.ne.s32.totalorder %s321, %s322
    %p333 = scmp.eq.s32.totalorder %s25, 0
    %p334 = por %p332, %p333
    %p335 = scmp.ne.s32.totalorder %s321, %s322
    %p336 = scmp.eq.s32.totalorder %s26, 1
    %p337 = por %p335, %p336
    %p339 = scmp.ne.s32.totalorder %s322, %s338
    %p340 = scmp.eq.s32.totalorder %s26, 0
    %p341 = por %p339, %p340
    %p342 = scmp.le.s32.totalorder 1, %s20
    %p343 = scmp.lt.s32.totalorder %s20, 3
    %p344 = pnand %p342, %p343
    %p345 = pneg %p344
    // Predicated region
    $region9: #{mlp_net_forward.1} parent=5 // pred_check
      _
    $region10: #{mlp_net_forward.1} parent=5 // pred_check_branch
      %347 = sbr.rel (%p344) target = $region12
    $region11: #{mlp_net_forward.1} parent=5 // pred_region
      %s348 = ssub.s32 %s20, 1
      // Predicated region
      $region13: #{mlp_net_forward.1} parent=11 // pred_check
        %p349 = pneg %p93
      $region14: #{mlp_net_forward.1} parent=11 // pred_check_branch
        %351 = sbr.rel (%p349) target = $region16
      $region15: #{mlp_net_forward.1} parent=11 // pred_region
        _
      $region16: #{mlp_net_forward.1} parent=11 // pred_fallthru
        _
      // Predicated region
      $region17: #{mlp_net_forward.1} parent=11 // pred_check
        %p352 = pneg %p114
      $region18: #{mlp_net_forward.1} parent=11 // pred_check_branch
        %354 = sbr.rel (%p352) target = $region20
      $region19: #{mlp_net_forward.1} parent=11 // pred_region
        _
      $region20: #{mlp_net_forward.1} parent=11 // pred_fallthru
        _
      // Predicated region
      $region21: #{mlp_net_forward.1} parent=11 // pred_check
        %p355 = pneg %p135
      $region22: #{mlp_net_forward.1} parent=11 // pred_check_branch
        %357 = sbr.rel (%p355) target = $region24
      $region23: #{mlp_net_forward.1} parent=11 // pred_region
        _
      $region24: #{mlp_net_forward.1} parent=11 // pred_fallthru
        _
      // Predicated region
      $region25: #{mlp_net_forward.1} parent=11 // pred_check
        %p358 = pneg %p156
      $region26: #{mlp_net_forward.1} parent=11 // pred_check_branch
        %360 = sbr.rel (%p358) target = $region28
      $region27: #{mlp_net_forward.1} parent=11 // pred_region
        _
      $region28: #{mlp_net_forward.1} parent=11 // pred_fallthru
        _
      // Predicated region
      $region29: #{mlp_net_forward.1} parent=11 // pred_check
        %p361 = pneg %p177
      $region30: #{mlp_net_forward.1} parent=11 // pred_check_branch
        %363 = sbr.rel (%p361) target = $region32
      $region31: #{mlp_net_forward.1} parent=11 // pred_region
        _
      $region32: #{mlp_net_forward.1} parent=11 // pred_fallthru
        _
      // Predicated region
      $region33: #{mlp_net_forward.1} parent=11 // pred_check
        %p364 = pneg %p198
      $region34: #{mlp_net_forward.1} parent=11 // pred_check_branch
        %366 = sbr.rel (%p364) target = $region36
      $region35: #{mlp_net_forward.1} parent=11 // pred_region
        _
      $region36: #{mlp_net_forward.1} parent=11 // pred_fallthru
        _
      // Predicated region
      $region37: #{mlp_net_forward.1} parent=11 // pred_check
        %p367 = pneg %p219
      $region38: #{mlp_net_forward.1} parent=11 // pred_check_branch
        %369 = sbr.rel (%p367) target = $region40
      $region39: #{mlp_net_forward.1} parent=11 // pred_region
        _
      $region40: #{mlp_net_forward.1} parent=11 // pred_fallthru
        _
      // Predicated region
      $region41: #{mlp_net_forward.1} parent=11 // pred_check
        %p370 = pneg %p240
      $region42: #{mlp_net_forward.1} parent=11 // pred_check_branch
        %372 = sbr.rel (%p370) target = $region44
      $region43: #{mlp_net_forward.1} parent=11 // pred_region
        _
      $region44: #{mlp_net_forward.1} parent=11 // pred_fallthru
        _
      // Predicated region
      $region45: #{mlp_net_forward.1} parent=11 // pred_check
        %p373 = pneg %p261
      $region46: #{mlp_net_forward.1} parent=11 // pred_check_branch
        %375 = sbr.rel (%p373) target = $region48
      $region47: #{mlp_net_forward.1} parent=11 // pred_region
        _
      $region48: #{mlp_net_forward.1} parent=11 // pred_fallthru
        _
      // Predicated region
      $region49: #{mlp_net_forward.1} parent=11 // pred_check
        %p376 = pneg %p282
      $region50: #{mlp_net_forward.1} parent=11 // pred_check_branch
        %378 = sbr.rel (%p376) target = $region52
      $region51: #{mlp_net_forward.1} parent=11 // pred_region
        _
      $region52: #{mlp_net_forward.1} parent=11 // pred_fallthru
        _
    $region12: #{mlp_net_forward.1} parent=5 // pred_fallthru
      _
    %p379 = scmp.lt.s32.totalorder %s20, 2
    // Predicated region
    $region53: #{mlp_net_forward.1} parent=5 // pred_check
      %p380 = pneg %p379
    $region54: #{mlp_net_forward.1} parent=5 // pred_check_branch
      %382 = sbr.rel (%p380) target = $region56
    $region55: #{mlp_net_forward.1} parent=5 // pred_region
      // Predicated region
      $region57: #{mlp_net_forward.1} parent=55 // pred_check
        %p383 = pneg %p40
      $region58: #{mlp_net_forward.1} parent=55 // pred_check_branch
        %385 = sbr.rel (%p383) target = $region60
      $region59: #{mlp_net_forward.1} parent=55 // pred_region
        %s386 = smul.u32 32, %s20
        %p387 = scmp.lt.s32.totalorder %s386, 63
        %s388 = scalar_select %p387, %s386, 63
        %s389 = smul.addr %s388, 8
        %s390 = scalar_lea.vmem %s0, %s389
        %s391 = smul.u32 32, %s20
      $region60: #{mlp_net_forward.1} parent=55 // pred_fallthru
        _
      // Predicated region
      $region61: #{mlp_net_forward.1} parent=55 // pred_check
        %p392 = pneg %p66
      $region62: #{mlp_net_forward.1} parent=55 // pred_check_branch
        %394 = sbr.rel (%p392) target = $region64
      $region63: #{mlp_net_forward.1} parent=55 // pred_region
        %s395 = smul.u32 32, %s20
        %p396 = scmp.lt.s32.totalorder %s395, 63
        %s397 = scalar_select %p396, %s395, 63
        %s398 = smul.addr %s397, 8
        %s399 = scalar_lea.vmem %s1, %s398
        %s400 = smul.u32 32, %s20
      $region64: #{mlp_net_forward.1} parent=55 // pred_fallthru
        _
    $region56: #{mlp_net_forward.1} parent=5 // pred_fallthru
      _
    %p401 = scmp.le.s32.totalorder 1, %s20
    %p402 = scmp.lt.s32.totalorder %s20, 3
    %p403 = pnand %p401, %p402
    %p404 = pneg %p403
    // Predicated region
    $region65: #{mlp_net_forward.1} parent=5 // pred_check
      _
    $region66: #{mlp_net_forward.1} parent=5 // pred_check_branch
      %406 = sbr.rel (%p403) target = $region68
    $region67: #{mlp_net_forward.1} parent=5 // pred_region
      %s407 = ssub.s32 %s20, 1
      %s408 = smul.u32 32, %s25
      %p409 = scmp.lt.s32.totalorder %s408, 63
      %s410 = scalar_select %p409, %s408, 63
      %s411 = smul.addr %s410, 8
      %s412 = scalar_lea.vmem %s0, %s411
      %p413 = pneg %p46
      %p414 = pneg %p43
      %s415 = smul.u32 32, %s25
      %p416 = scmp.lt.s32.totalorder %s415, 63
      %s417 = scalar_select %p416, %s415, 63
      %s418 = smul.addr %s417, 8
      %s419 = scalar_lea.vmem %s1, %s418
      %p420 = pneg %p72
      %p421 = pneg %p69
      %p422 = pneg %p93
      %p423 = pneg %p90
      %p424 = pneg %p114
      %p425 = pneg %p111
      %p426 = pneg %p135
      %p427 = pneg %p132
      %p428 = pneg %p156
      %p429 = pneg %p153
      %p430 = pneg %p177
      %p431 = pneg %p174
      %p432 = pneg %p198
      %p433 = pneg %p195
      %p434 = pneg %p219
      %p435 = pneg %p216
      %p436 = pneg %p240
      %p437 = pneg %p237
      %p438 = pneg %p261
      %p439 = pneg %p258
      %p440 = pneg %p282
      %p441 = pneg %p279
      %p442 = pneg %p308
      %p443 = pneg %p305
      %s444 = smul.u32 32, %s25
      %p445 = scmp.lt.s32.totalorder %s444, 63
      %s446 = scalar_select %p445, %s444, 63
      %s447 = smul.addr %s446, 8
      %s448 = scalar_lea.vmem %s12, %s447
      %p449 = pneg %p334
      %p450 = pneg %p331
      %p451 = scmp.lt.s32.totalorder %s25, 1
      %s452 = scalar_select %p451, %s25, 1
      %s453 = scalar_lea.vmem %s13, %s452
      %s454 = smul.u32 32, %s25
      %p455 = scmp.lt.s32.totalorder %s454, 63
      %s456 = scalar_select %p455, %s454, 63
      %s457 = smul.addr %s456, 8
      %s458 = scalar_lea.vmem %s0, %s457
      %s459 = smul.u32 32, %s25
      %s460 = smul.u32 32, %s25
      %p461 = scmp.lt.s32.totalorder %s460, 63
      %s462 = scalar_select %p461, %s460, 63
      %s463 = smul.addr %s462, 8
      %s464 = scalar_lea.vmem %s1, %s463
      %s465 = smul.u32 32, %s25
      %s466 = smul.u32 32, %s25
      %p467 = scmp.lt.s32.totalorder %s466, 63
      %s468 = scalar_select %p467, %s466, 63
      %s469 = smul.addr %s468, 8
      %s470 = scalar_lea.vmem %s12, %s469
      %s471 = smul.u32 32, %s25
      %p472 = scmp.lt.s32.totalorder %s25, 1
      %s473 = scalar_select %p472, %s25, 1
      %s474 = scalar_lea.vmem %s13, %s473
      %v475 = vld [vmem:[%s458] sm:$0xff]
      %v476 = vld [vmem:[%s458 + $0x8] sm:$0xff]
      %v477 = vld [vmem:[%s458 + $0x10] sm:$0xff]
      %v478 = vld [vmem:[%s458 + $0x18] sm:$0xff]
      %v479 = vld [vmem:[%s458 + $0x20] sm:$0xff]
      %v480 = vld [vmem:[%s458 + $0x28] sm:$0xff]
      %v481 = vld [vmem:[%s458 + $0x30] sm:$0xff]
      %v482 = vld [vmem:[%s458 + $0x38] sm:$0xff]
      %v483 = vld [vmem:[%s458 + $0x40] sm:$0xff]
      %v484 = vld [vmem:[%s458 + $0x48] sm:$0xff]
      %v485 = vld [vmem:[%s458 + $0x50] sm:$0xff]
      %v486 = vld [vmem:[%s458 + $0x58] sm:$0xff]
      %v487 = vld [vmem:[%s458 + $0x60] sm:$0xff]
      %v488 = vld [vmem:[%s458 + $0x68] sm:$0xff]
      %v489 = vld [vmem:[%s458 + $0x70] sm:$0xff]
      %v490 = vld [vmem:[%s458 + $0x78] sm:$0xff]
      %v491 = vld [vmem:[%s458 + $0x80] sm:$0xff]
      %v492 = vld [vmem:[%s458 + $0x88] sm:$0xff]
      %v493 = vld [vmem:[%s458 + $0x90] sm:$0xff]
      %v494 = vld [vmem:[%s458 + $0x98] sm:$0xff]
      %v495 = vld [vmem:[%s458 + $0xa0] sm:$0xff]
      %v496 = vld [vmem:[%s458 + $0xa8] sm:$0xff]
      %v497 = vld [vmem:[%s458 + $0xb0] sm:$0xff]
      %v498 = vld [vmem:[%s458 + $0xb8] sm:$0xff]
      %v499 = vld [vmem:[%s458 + $0xc0] sm:$0xff]
      %v500 = vld [vmem:[%s458 + $0xc8] sm:$0xff]
      %v501 = vld [vmem:[%s458 + $0xd0] sm:$0xff]
      %v502 = vld [vmem:[%s458 + $0xd8] sm:$0xff]
      %v503 = vld [vmem:[%s458 + $0xe0] sm:$0xff]
      %v504 = vld [vmem:[%s458 + $0xe8] sm:$0xff]
      %v505 = vld [vmem:[%s458 + $0xf0] sm:$0xff]
      %v506 = vld [vmem:[%s458 + $0xf8] sm:$0xff]
      %v507 = vld [vmem:[%s2] sm:$0xff]
      %v508 = vld [vmem:[%s2 + $0x8] sm:$0xff]
      %v509 = vld [vmem:[%s2 + $0x10] sm:$0xff]
      %v510 = vld [vmem:[%s2 + $0x18] sm:$0xff]
      %v511 = vld [vmem:[%s2 + $0x20] sm:$0xff]
      %v512 = vld [vmem:[%s2 + $0x28] sm:$0xff]
      %v513 = vld [vmem:[%s2 + $0x30] sm:$0xff]
      %v514 = vld [vmem:[%s2 + $0x38] sm:$0xff]
      %v515 = vld [vmem:[%s2 + $0x40] sm:$0xff]
      %v516 = vld [vmem:[%s2 + $0x48] sm:$0xff]
      %v517 = vld [vmem:[%s2 + $0x50] sm:$0xff]
      %v518 = vld [vmem:[%s2 + $0x58] sm:$0xff]
      %v519 = vld [vmem:[%s2 + $0x60] sm:$0xff]
      %v520 = vld [vmem:[%s2 + $0x68] sm:$0xff]
      %v521 = vld [vmem:[%s2 + $0x70] sm:$0xff]
      %v522 = vld [vmem:[%s2 + $0x78] sm:$0xff]
      %v523 = vld [vmem:[%s3] sm:$0x1]
      %v525 = vlaneseq
      %v526 = vshrl.u32 %v525, 7
      %v527 = vsub.s32 0, %v526
      %v528 = vrot.slane %v523, %v527
      %530 = vmatprep.subr.mxu0 0.0
      %531 = vmatpush1.msra.mxu0 %v507
      %532 = vmatprep.subr.mxu0 0.0
      %533 = vmatpush1.msra.mxu0 %v508
      %534 = vmatprep.subr.mxu0 0.0
      %535 = vmatpush1.msra.mxu0 %v509
      %536 = vmatprep.subr.mxu0 0.0
      %537 = vmatpush1.msra.mxu0 %v510
      %538 = vmatprep.subr.mxu0 0.0
      %539 = vmatpush1.msra.mxu0 %v511
      %540 = vmatprep.subr.mxu0 0.0
      %541 = vmatpush1.msra.mxu0 %v512
      %542 = vmatprep.subr.mxu0 0.0
      %543 = vmatpush1.msra.mxu0 %v513
      %544 = vmatprep.subr.mxu0 0.0
      %545 = vmatpush1.msra.mxu0 %v514
      %546 = vmatprep.subr.mxu0 0.0
      %547 = vmatpush1.msra.mxu0 %v515
      %548 = vmatprep.subr.mxu0 0.0
      %549 = vmatpush1.msra.mxu0 %v516
      %550 = vmatprep.subr.mxu0 0.0
      %551 = vmatpush1.msra.mxu0 %v517
      %552 = vmatprep.subr.mxu0 0.0
      %553 = vmatpush1.msra.mxu0 %v518
      %554 = vmatprep.subr.mxu0 0.0
      %555 = vmatpush1.msra.mxu0 %v519
      %556 = vmatprep.subr.mxu0 0.0
      %557 = vmatpush1.msra.mxu0 %v520
      %558 = vmatprep.subr.mxu0 0.0
      %559 = vmatpush1.msra.mxu0 %v521
      %560 = vmatprep.subr.mxu0 0.0
      %561 = vmatpush1.msra.mxu0 %v522
      %562 = vmatprep.subr.mxu0 0.0
      %563 = vmatpush1.msra.mxu0 0.0
      %564 = vmatprep.subr.mxu0 0.0
      %565 = vmatpush1.msra.mxu0 0.0
      %566 = vmatprep.subr.mxu0 0.0
      %567 = vmatpush1.msra.mxu0 0.0
      %568 = vmatprep.subr.mxu0 0.0
      %569 = vmatpush1.msra.mxu0 0.0
      %570 = vmatprep.subr.mxu0 0.0
      %571 = vmatpush1.msra.mxu0 0.0
      %572 = vmatprep.subr.mxu0 0.0
      %573 = vmatpush1.msra.mxu0 0.0
      %574 = vmatprep.subr.mxu0 0.0
      %575 = vmatpush1.msra.mxu0 0.0
      %576 = vmatprep.subr.mxu0 0.0
      %577 = vmatpush1.msra.mxu0 0.0
      %578 = vmatprep.subr.mxu0 0.0
      %579 = vmatpush1.msra.mxu0 0.0
      %580 = vmatprep.subr.mxu0 0.0
      %581 = vmatpush1.msra.mxu0 0.0
      %582 = vmatprep.subr.mxu0 0.0
      %583 = vmatpush1.msra.mxu0 0.0
      %584 = vmatprep.subr.mxu0 0.0
      %585 = vmatpush1.msra.mxu0 0.0
      %586 = vmatprep.subr.mxu0 0.0
      %587 = vmatpush1.msra.mxu0 0.0
      %588 = vmatprep.subr.mxu0 0.0
      %589 = vmatpush1.msra.mxu0 0.0
      %590 = vmatprep.subr.mxu0 0.0
      %591 = vmatpush1.msra.mxu0 0.0
      %592 = vmatprep.subr.mxu0 0.0
      %593 = vmatpush1.msra.mxu0 0.0
      %594 = vmatprep.mubr.f32.mxu0 0.0
      %595 = vmatmul.mubr.f32.gmra.mrb[0].mxu0 %v475
      %v596 = vpop.f32.mrb[0].mxu0
      %v597 = vadd.f32 %v528, %v596
      %v598 = vpop.f32.mrb[0].mxu0
      %599 = vmatprep.mubr.f32.mxu0 0.0
      %600 = vmatmul.mubr.f32.gmra.mrb[0].mxu0 %v476
      %v601 = vpop.f32.mrb[0].mxu0
      %v602 = vadd.f32 %v528, %v601
      %v603 = vpop.f32.mrb[0].mxu0
      %604 = vmatprep.mubr.f32.mxu0 0.0
      %605 = vmatmul.mubr.f32.gmra.mrb[0].mxu0 %v477
      %v606 = vpop.f32.mrb[0].mxu0
      %v607 = vadd.f32 %v528, %v606
      %v608 = vpop.f32.mrb[0].mxu0
      %609 = vmatprep.mubr.f32.mxu0 0.0
      %610 = vmatmul.mubr.f32.gmra.mrb[0].mxu0 %v478
      %v611 = vpop.f32.mrb[0].mxu0
      %v612 = vadd.f32 %v528, %v611
      %v613 = vpop.f32.mrb[0].mxu0
      %614 = vmatprep.mubr.f32.mxu0 0.0
      %615 = vmatmul.mubr.f32.gmra.mrb[0].mxu0 %v479
      %v616 = vpop.f32.mrb[0].mxu0
      %v617 = vadd.f32 %v528, %v616
      %v618 = vpop.f32.mrb[0].mxu0
      %619 = vmatprep.mubr.f32.mxu0 0.0
      %620 = vmatmul.mubr.f32.gmra.mrb[0].mxu0 %v480
      %v621 = vpop.f32.mrb[0].mxu0
      %v622 = vadd.f32 %v528, %v621
      %v623 = vpop.f32.mrb[0].mxu0
      %624 = vmatprep.mubr.f32.mxu0 0.0
      %625 = vmatmul.mubr.f32.gmra.mrb[0].mxu0 %v481
      %v626 = vpop.f32.mrb[0].mxu0
      %v627 = vadd.f32 %v528, %v626
      %v628 = vpop.f32.mrb[0].mxu0
      %629 = vmatprep.mubr.f32.mxu0 0.0
      %630 = vmatmul.mubr.f32.gmra.mrb[0].mxu0 %v482
      %v631 = vpop.f32.mrb[0].mxu0
      %v632 = vadd.f32 %v528, %v631
      %v633 = vpop.f32.mrb[0].mxu0
      %634 = vmatprep.mubr.f32.mxu0 0.0
      %635 = vmatmul.mubr.f32.gmra.mrb[0].mxu0 %v483
      %v636 = vpop.f32.mrb[0].mxu0
      %v637 = vadd.f32 %v528, %v636
      %v638 = vpop.f32.mrb[0].mxu0
      %639 = vmatprep.mubr.f32.mxu0 0.0
      %640 = vmatmul.mubr.f32.gmra.mrb[0].mxu0 %v484
      %v641 = vpop.f32.mrb[0].mxu0
      %v642 = vadd.f32 %v528, %v641
      %v643 = vpop.f32.mrb[0].mxu0
      %644 = vmatprep.mubr.f32.mxu0 0.0
      %645 = vmatmul.mubr.f32.gmra.mrb[0].mxu0 %v485
      %v646 = vpop.f32.mrb[0].mxu0
      %v647 = vadd.f32 %v528, %v646
      %v648 = vpop.f32.mrb[0].mxu0
      %649 = vmatprep.mubr.f32.mxu0 0.0
      %650 = vmatmul.mubr.f32.gmra.mrb[0].mxu0 %v486
      %v651 = vpop.f32.mrb[0].mxu0
      %v652 = vadd.f32 %v528, %v651
      %v653 = vpop.f32.mrb[0].mxu0
      %654 = vmatprep.mubr.f32.mxu0 0.0
      %655 = vmatmul.mubr.f32.gmra.mrb[0].mxu0 %v487
      %v656 = vpop.f32.mrb[0].mxu0
      %v657 = vadd.f32 %v528, %v656
      %v658 = vpop.f32.mrb[0].mxu0
      %659 = vmatprep.mubr.f32.mxu0 0.0
      %660 = vmatmul.mubr.f32.gmra.mrb[0].mxu0 %v488
      %v661 = vpop.f32.mrb[0].mxu0
      %v662 = vadd.f32 %v528, %v661
      %v663 = vpop.f32.mrb[0].mxu0
      %664 = vmatprep.mubr.f32.mxu0 0.0
      %665 = vmatmul.mubr.f32.gmra.mrb[0].mxu0 %v489
      %v666 = vpop.f32.mrb[0].mxu0
      %v667 = vadd.f32 %v528, %v666
      %v668 = vpop.f32.mrb[0].mxu0
      %669 = vmatprep.mubr.f32.mxu0 0.0
      %670 = vmatmul.mubr.f32.gmra.mrb[0].mxu0 %v490
      %v671 = vpop.f32.mrb[0].mxu0
      %v672 = vadd.f32 %v528, %v671
      %v673 = vpop.f32.mrb[0].mxu0
      %674 = vmatprep.mubr.f32.mxu0 0.0
      %675 = vmatmul.mubr.f32.gmra.mrb[0].mxu0 %v491
      %v676 = vpop.f32.mrb[0].mxu0
      %v677 = vadd.f32 %v528, %v676
      %v678 = vpop.f32.mrb[0].mxu0
      %679 = vmatprep.mubr.f32.mxu0 0.0
      %680 = vmatmul.mubr.f32.gmra.mrb[0].mxu0 %v492
      %v681 = vpop.f32.mrb[0].mxu0
      %v682 = vadd.f32 %v528, %v681
      %v683 = vpop.f32.mrb[0].mxu0
      %684 = vmatprep.mubr.f32.mxu0 0.0
      %685 = vmatmul.mubr.f32.gmra.mrb[0].mxu0 %v493
      %v686 = vpop.f32.mrb[0].mxu0
      %v687 = vadd.f32 %v528, %v686
      %v688 = vpop.f32.mrb[0].mxu0
      %689 = vmatprep.mubr.f32.mxu0 0.0
      %690 = vmatmul.mubr.f32.gmra.mrb[0].mxu0 %v494
      %v691 = vpop.f32.mrb[0].mxu0
      %v692 = vadd.f32 %v528, %v691
      %v693 = vpop.f32.mrb[0].mxu0
      %694 = vmatprep.mubr.f32.mxu0 0.0
      %695 = vmatmul.mubr.f32.gmra.mrb[0].mxu0 %v495
      %v696 = vpop.f32.mrb[0].mxu0
      %v697 = vadd.f32 %v528, %v696
      %v698 = vpop.f32.mrb[0].mxu0
      %699 = vmatprep.mubr.f32.mxu0 0.0
      %700 = vmatmul.mubr.f32.gmra.mrb[0].mxu0 %v496
      %v701 = vpop.f32.mrb[0].mxu0
      %v702 = vadd.f32 %v528, %v701
      %v703 = vpop.f32.mrb[0].mxu0
      %704 = vmatprep.mubr.f32.mxu0 0.0
      %705 = vmatmul.mubr.f32.gmra.mrb[0].mxu0 %v497
      %v706 = vpop.f32.mrb[0].mxu0
      %v707 = vadd.f32 %v528, %v706
      %v708 = vpop.f32.mrb[0].mxu0
      %709 = vmatprep.mubr.f32.mxu0 0.0
      %710 = vmatmul.mubr.f32.gmra.mrb[0].mxu0 %v498
      %v711 = vpop.f32.mrb[0].mxu0
      %v712 = vadd.f32 %v528, %v711
      %v713 = vpop.f32.mrb[0].mxu0
      %714 = vmatprep.mubr.f32.mxu0 0.0
      %715 = vmatmul.mubr.f32.gmra.mrb[0].mxu0 %v499
      %v716 = vpop.f32.mrb[0].mxu0
      %v717 = vadd.f32 %v528, %v716
      %v718 = vpop.f32.mrb[0].mxu0
      %719 = vmatprep.mubr.f32.mxu0 0.0
      %720 = vmatmul.mubr.f32.gmra.mrb[0].mxu0 %v500
      %v721 = vpop.f32.mrb[0].mxu0
      %v722 = vadd.f32 %v528, %v721
      %v723 = vpop.f32.mrb[0].mxu0
      %724 = vmatprep.mubr.f32.mxu0 0.0
      %725 = vmatmul.mubr.f32.gmra.mrb[0].mxu0 %v501
      %v726 = vpop.f32.mrb[0].mxu0
      %v727 = vadd.f32 %v528, %v726
      %v728 = vpop.f32.mrb[0].mxu0
      %729 = vmatprep.mubr.f32.mxu0 0.0
      %730 = vmatmul.mubr.f32.gmra.mrb[0].mxu0 %v502
      %v731 = vpop.f32.mrb[0].mxu0
      %v732 = vadd.f32 %v528, %v731
      %v733 = vpop.f32.mrb[0].mxu0
      %734 = vmatprep.mubr.f32.mxu0 0.0
      %735 = vmatmul.mubr.f32.gmra.mrb[0].mxu0 %v503
      %v736 = vpop.f32.mrb[0].mxu0
      %v737 = vadd.f32 %v528, %v736
      %v738 = vpop.f32.mrb[0].mxu0
      %739 = vmatprep.mubr.f32.mxu0 0.0
      %740 = vmatmul.mubr.f32.gmra.mrb[0].mxu0 %v504
      %v741 = vpop.f32.mrb[0].mxu0
      %v742 = vadd.f32 %v528, %v741
      %v743 = vpop.f32.mrb[0].mxu0
      %744 = vmatprep.mubr.f32.mxu0 0.0
      %745 = vmatmul.mubr.f32.gmra.mrb[0].mxu0 %v505
      %v746 = vpop.f32.mrb[0].mxu0
      %v747 = vadd.f32 %v528, %v746
      %v748 = vpop.f32.mrb[0].mxu0
      %749 = vmatprep.mubr.f32.mxu0 0.0
      %750 = vmatmul.mubr.f32.gmra.mrb[0].mxu0 %v506
      %v751 = vpop.f32.mrb[0].mxu0
      %v752 = vadd.f32 %v528, %v751
      %v753 = vpop.f32.mrb[0].mxu0
      %754 = vdwg.mxu0
      %v755 = vxor.u32 %v597, 2147483648
      %v756 = vxor.u32 %v602, 2147483648
      %v757 = vxor.u32 %v607, 2147483648
      %v758 = vxor.u32 %v612, 2147483648
      %v759 = vxor.u32 %v617, 2147483648
      %v760 = vxor.u32 %v622, 2147483648
      %v761 = vxor.u32 %v627, 2147483648
      %v762 = vxor.u32 %v632, 2147483648
      %v763 = vxor.u32 %v637, 2147483648
      %v764 = vxor.u32 %v642, 2147483648
      %v765 = vxor.u32 %v647, 2147483648
      %v766 = vxor.u32 %v652, 2147483648
      %v767 = vxor.u32 %v657, 2147483648
      %v768 = vxor.u32 %v662, 2147483648
      %v769 = vxor.u32 %v667, 2147483648
      %v770 = vxor.u32 %v672, 2147483648
      %v771 = vxor.u32 %v677, 2147483648
      %v772 = vxor.u32 %v682, 2147483648
      %v773 = vxor.u32 %v687, 2147483648
      %v774 = vxor.u32 %v692, 2147483648
      %v775 = vxor.u32 %v697, 2147483648
      %v776 = vxor.u32 %v702, 2147483648
      %v777 = vxor.u32 %v707, 2147483648
      %v778 = vxor.u32 %v712, 2147483648
      %v779 = vxor.u32 %v717, 2147483648
      %v780 = vxor.u32 %v722, 2147483648
      %v781 = vxor.u32 %v727, 2147483648
      %v782 = vxor.u32 %v732, 2147483648
      %v783 = vxor.u32 %v737, 2147483648
      %v784 = vxor.u32 %v742, 2147483648
      %v785 = vxor.u32 %v747, 2147483648
      %v786 = vxor.u32 %v752, 2147483648
      %v787 = vmul.f32 %v755, 1.442695
      %v788 = vpow.pop %v787
      %v789 = vmul.f32 %v756, 1.442695
      %v790 = vpow.pop %v789
      %v791 = vmul.f32 %v757, 1.442695
      %v792 = vpow.pop %v791
      %v793 = vmul.f32 %v758, 1.442695
      %v794 = vpow.pop %v793
      %v795 = vmul.f32 %v759, 1.442695
      %v796 = vpow.pop %v795
      %v797 = vmul.f32 %v760, 1.442695
      %v798 = vpow.pop %v797
      %v799 = vmul.f32 %v761, 1.442695
      %v800 = vpow.pop %v799
      %v801 = vmul.f32 %v762, 1.442695
      %v802 = vpow.pop %v801
      %v803 = vmul.f32 %v763, 1.442695
      %v804 = vpow.pop %v803
      %v805 = vmul.f32 %v764, 1.442695
      %v806 = vpow.pop %v805
      %v807 = vmul.f32 %v765, 1.442695
      %v808 = vpow.pop %v807
      %v809 = vmul.f32 %v766, 1.442695
      %v810 = vpow.pop %v809
      %v811 = vmul.f32 %v767, 1.442695
      %v812 = vpow.pop %v811
      %v813 = vmul.f32 %v768, 1.442695
      %v814 = vpow.pop %v813
      %v815 = vmul.f32 %v769, 1.442695
      %v816 = vpow.pop %v815
      %v817 = vmul.f32 %v770, 1.442695
      %v818 = vpow.pop %v817
      %v819 = vmul.f32 %v771, 1.442695
      %v820 = vpow.pop %v819
      %v821 = vmul.f32 %v772, 1.442695
      %v822 = vpow.pop %v821
      %v823 = vmul.f32 %v773, 1.442695
      %v824 = vpow.pop %v823
      %v825 = vmul.f32 %v774, 1.442695
      %v826 = vpow.pop %v825
      %v827 = vmul.f32 %v775, 1.442695
      %v828 = vpow.pop %v827
      %v829 = vmul.f32 %v776, 1.442695
      %v830 = vpow.pop %v829
      %v831 = vmul.f32 %v777, 1.442695
      %v832 = vpow.pop %v831
      %v833 = vmul.f32 %v778, 1.442695
      %v834 = vpow.pop %v833
      %v835 = vmul.f32 %v779, 1.442695
      %v836 = vpow.pop %v835
      %v837 = vmul.f32 %v780, 1.442695
      %v838 = vpow.pop %v837
      %v839 = vmul.f32 %v781, 1.442695
      %v840 = vpow.pop %v839
      %v841 = vmul.f32 %v782, 1.442695
      %v842 = vpow.pop %v841
      %v843 = vmul.f32 %v783, 1.442695
      %v844 = vpow.pop %v843
      %v845 = vmul.f32 %v784, 1.442695
      %v846 = vpow.pop %v845
      %v847 = vmul.f32 %v785, 1.442695
      %v848 = vpow.pop %v847
      %v849 = vmul.f32 %v786, 1.442695
      %v850 = vpow.pop %v849
      %v851 = vadd.f32 %v788, 1.0
      %v852 = vadd.f32 %v790, 1.0
      %v853 = vadd.f32 %v792, 1.0
      %v854 = vadd.f32 %v794, 1.0
      %v855 = vadd.f32 %v796, 1.0
      %v856 = vadd.f32 %v798, 1.0
      %v857 = vadd.f32 %v800, 1.0
      %v858 = vadd.f32 %v802, 1.0
      %v859 = vadd.f32 %v804, 1.0
      %v860 = vadd.f32 %v806, 1.0
      %v861 = vadd.f32 %v808, 1.0
      %v862 = vadd.f32 %v810, 1.0
      %v863 = vadd.f32 %v812, 1.0
      %v864 = vadd.f32 %v814, 1.0
      %v865 = vadd.f32 %v816, 1.0
      %v866 = vadd.f32 %v818, 1.0
      %v867 = vadd.f32 %v820, 1.0
      %v868 = vadd.f32 %v822, 1.0
      %v869 = vadd.f32 %v824, 1.0
      %v870 = vadd.f32 %v826, 1.0
      %v871 = vadd.f32 %v828, 1.0
      %v872 = vadd.f32 %v830, 1.0
      %v873 = vadd.f32 %v832, 1.0
      %v874 = vadd.f32 %v834, 1.0
      %v875 = vadd.f32 %v836, 1.0
      %v876 = vadd.f32 %v838, 1.0
      %v877 = vadd.f32 %v840, 1.0
      %v878 = vadd.f32 %v842, 1.0
      %v879 = vadd.f32 %v844, 1.0
      %v880 = vadd.f32 %v846, 1.0
      %v881 = vadd.f32 %v848, 1.0
      %v882 = vadd.f32 %v850, 1.0
      %v883 = vrcp.pop %v851
      %v884 = vmul.f32 1.0, %v883
      %v885 = vrcp.pop %v852
      %v886 = vmul.f32 1.0, %v885
      %v887 = vrcp.pop %v853
      %v888 = vmul.f32 1.0, %v887
      %v889 = vrcp.pop %v854
      %v890 = vmul.f32 1.0, %v889
      %v891 = vrcp.pop %v855
      %v892 = vmul.f32 1.0, %v891
      %v893 = vrcp.pop %v856
      %v894 = vmul.f32 1.0, %v893
      %v895 = vrcp.pop %v857
      %v896 = vmul.f32 1.0, %v895
      %v897 = vrcp.pop %v858
      %v898 = vmul.f32 1.0, %v897
      %v899 = vrcp.pop %v859
      %v900 = vmul.f32 1.0, %v899
      %v901 = vrcp.pop %v860
      %v902 = vmul.f32 1.0, %v901
      %v903 = vrcp.pop %v861
      %v904 = vmul.f32 1.0, %v903
      %v905 = vrcp.pop %v862
      %v906 = vmul.f32 1.0, %v905
      %v907 = vrcp.pop %v863
      %v908 = vmul.f32 1.0, %v907
      %v909 = vrcp.pop %v864
      %v910 = vmul.f32 1.0, %v909
      %v911 = vrcp.pop %v865
      %v912 = vmul.f32 1.0, %v911
      %v913 = vrcp.pop %v866
      %v914 = vmul.f32 1.0, %v913
      %v915 = vrcp.pop %v867
      %v916 = vmul.f32 1.0, %v915
      %v917 = vrcp.pop %v868
      %v918 = vmul.f32 1.0, %v917
      %v919 = vrcp.pop %v869
      %v920 = vmul.f32 1.0, %v919
      %v921 = vrcp.pop %v870
      %v922 = vmul.f32 1.0, %v921
      %v923 = vrcp.pop %v871
      %v924 = vmul.f32 1.0, %v923
      %v925 = vrcp.pop %v872
      %v926 = vmul.f32 1.0, %v925
      %v927 = vrcp.pop %v873
      %v928 = vmul.f32 1.0, %v927
      %v929 = vrcp.pop %v874
      %v930 = vmul.f32 1.0, %v929
      %v931 = vrcp.pop %v875
      %v932 = vmul.f32 1.0, %v931
      %v933 = vrcp.pop %v876
      %v934 = vmul.f32 1.0, %v933
      %v935 = vrcp.pop %v877
      %v936 = vmul.f32 1.0, %v935
      %v937 = vrcp.pop %v878
      %v938 = vmul.f32 1.0, %v937
      %v939 = vrcp.pop %v879
      %v940 = vmul.f32 1.0, %v939
      %v941 = vrcp.pop %v880
      %v942 = vmul.f32 1.0, %v941
      %v943 = vrcp.pop %v881
      %v944 = vmul.f32 1.0, %v943
      %v945 = vrcp.pop %v882
      %v946 = vmul.f32 1.0, %v945
      %v947 = vld [vmem:[%s4] sm:$0xff]
      %v948 = vld [vmem:[%s4 + $0x8] sm:$0xff]
      %v949 = vld [vmem:[%s4 + $0x10] sm:$0xff]
      %v950 = vld [vmem:[%s4 + $0x18] sm:$0xff]
      %v951 = vld [vmem:[%s4 + $0x20] sm:$0xff]
      %v952 = vld [vmem:[%s4 + $0x28] sm:$0xff]
      %v953 = vld [vmem:[%s4 + $0x30] sm:$0xff]
      %v954 = vld [vmem:[%s4 + $0x38] sm:$0xff]
      %v955 = vld [vmem:[%s4 + $0x40] sm:$0xff]
      %v956 = vld [vmem:[%s4 + $0x48] sm:$0xff]
      %v957 = vld [vmem:[%s4 + $0x50] sm:$0xff]
      %v958 = vld [vmem:[%s4 + $0x58] sm:$0xff]
      %v959 = vld [vmem:[%s4 + $0x60] sm:$0xff]
      %v960 = vld [vmem:[%s4 + $0x68] sm:$0xff]
      %v961 = vld [vmem:[%s4 + $0x70] sm:$0xff]
      %v962 = vld [vmem:[%s4 + $0x78] sm:$0xff]
      %v963 = vld [vmem:[%s5] sm:$0x1]
      %v965 = vlaneseq
      %v966 = vshrl.u32 %v965, 7
      %v967 = vsub.s32 0, %v966
      %v968 = vrot.slane %v963, %v967
      %970 = vmatprep.subr.mxu0 0.0
      %971 = vmatpush1.msra.mxu0 %v947
      %972 = vmatprep.subr.mxu0 0.0
      %973 = vmatpush1.msra.mxu0 %v948
      %974 = vmatprep.subr.mxu0 0.0
      %975 = vmatpush1.msra.mxu0 %v949
      %976 = vmatprep.subr.mxu0 0.0
      %977 = vmatpush1.msra.mxu0 %v950
      %978 = vmatprep.subr.mxu0 0.0
      %979 = vmatpush1.msra.mxu0 %v951
      %980 = vmatprep.subr.mxu0 0.0
      %981 = vmatpush1.msra.mxu0 %v952
      %982 = vmatprep.subr.mxu0 0.0
      %983 = vmatpush1.msra.mxu0 %v953
      %984 = vmatprep.subr.mxu0 0.0
      %985 = vmatpush1.msra.mxu0 %v954
      %986 = vmatprep.subr.mxu0 0.0
      %987 = vmatpush1.msra.mxu0 %v955
      %988 = vmatprep.subr.mxu0 0.0
      %989 = vmatpush1.msra.mxu0 %v956
      %990 = vmatprep.subr.mxu0 0.0
      %991 = vmatpush1.msra.mxu0 %v957
      %992 = vmatprep.subr.mxu0 0.0
      %993 = vmatpush1.msra.mxu0 %v958
      %994 = vmatprep.subr.mxu0 0.0
      %995 = vmatpush1.msra.mxu0 %v959
      %996 = vmatprep.subr.mxu0 0.0
      %997 = vmatpush1.msra.mxu0 %v960
      %998 = vmatprep.subr.mxu0 0.0
      %999 = vmatpush1.msra.mxu0 %v961
      %1000 = vmatprep.subr.mxu0 0.0
      %1001 = vmatpush1.msra.mxu0 %v962
      %1002 = vmatprep.subr.mxu0 0.0
      %1003 = vmatpush1.msra.mxu0 0.0
      %1004 = vmatprep.subr.mxu0 0.0
      %1005 = vmatpush1.msra.mxu0 0.0
      %1006 = vmatprep.subr.mxu0 0.0
      %1007 = vmatpush1.msra.mxu0 0.0
      %1008 = vmatprep.subr.mxu0 0.0
      %1009 = vmatpush1.msra.mxu0 0.0
      %1010 = vmatprep.subr.mxu0 0.0
      %1011 = vmatpush1.msra.mxu0 0.0
      %1012 = vmatprep.subr.mxu0 0.0
      %1013 = vmatpush1.msra.mxu0 0.0
      %1014 = vmatprep.subr.mxu0 0.0
      %1015 = vmatpush1.msra.mxu0 0.0
      %1016 = vmatprep.subr.mxu0 0.0
      %1017 = vmatpush1.msra.mxu0 0.0
      %1018 = vmatprep.subr.mxu0 0.0
      %1019 = vmatpush1.msra.mxu0 0.0
      %1020 = vmatprep.subr.mxu0 0.0
      %1021 = vmatpush1.msra.mxu0 0.0
      %1022 = vmatprep.subr.mxu0 0.0
      %1023 = vmatpush1.msra.mxu0 0.0
      %1024 = vmatprep.subr.mxu0 0.0
      %1025 = vmatpush1.msra.mxu0 0.0
      %1026 = vmatprep.subr.mxu0 0.0
      %1027 = vmatpush1.msra.mxu0 0.0
      %1028 = vmatprep.subr.mxu0 0.0
      %1029 = vmatpush1.msra.mxu0 0.0
      %1030 = vmatprep.subr.mxu0 0.0
      %1031 = vmatpush1.msra.mxu0 0.0
      %1032 = vmatprep.subr.mxu0 0.0
      %1033 = vmatpush1.msra.mxu0 0.0
      %1034 = vmatprep.mubr.f32.mxu0 0.0
      %1035 = vmatmul.mubr.f32.gmra.mrb[0].mxu0 %v884
      %v1036 = vpop.f32.mrb[0].mxu0
      %v1037 = vadd.f32 %v968, %v1036
      %v1038 = vpop.f32.mrb[0].mxu0
      %1039 = vmatprep.mubr.f32.mxu0 0.0
      %1040 = vmatmul.mubr.f32.gmra.mrb[0].mxu0 %v886
      %v1041 = vpop.f32.mrb[0].mxu0
      %v1042 = vadd.f32 %v968, %v1041
      %v1043 = vpop.f32.mrb[0].mxu0
      %1044 = vmatprep.mubr.f32.mxu0 0.0
      %1045 = vmatmul.mubr.f32.gmra.mrb[0].mxu0 %v888
      %v1046 = vpop.f32.mrb[0].mxu0
      %v1047 = vadd.f32 %v968, %v1046
      %v1048 = vpop.f32.mrb[0].mxu0
      %1049 = vmatprep.mubr.f32.mxu0 0.0
      %1050 = vmatmul.mubr.f32.gmra.mrb[0].mxu0 %v890
      %v1051 = vpop.f32.mrb[0].mxu0
      %v1052 = vadd.f32 %v968, %v1051
      %v1053 = vpop.f32.mrb[0].mxu0
      %1054 = vmatprep.mubr.f32.mxu0 0.0
      %1055 = vmatmul.mubr.f32.gmra.mrb[0].mxu0 %v892
      %v1056 = vpop.f32.mrb[0].mxu0
      %v1057 = vadd.f32 %v968, %v1056
      %v1058 = vpop.f32.mrb[0].mxu0
      %1059 = vmatprep.mubr.f32.mxu0 0.0
      %1060 = vmatmul.mubr.f32.gmra.mrb[0].mxu0 %v894
      %v1061 = vpop.f32.mrb[0].mxu0
      %v1062 = vadd.f32 %v968, %v1061
      %v1063 = vpop.f32.mrb[0].mxu0
      %1064 = vmatprep.mubr.f32.mxu0 0.0
      %1065 = vmatmul.mubr.f32.gmra.mrb[0].mxu0 %v896
      %v1066 = vpop.f32.mrb[0].mxu0
      %v1067 = vadd.f32 %v968, %v1066
      %v1068 = vpop.f32.mrb[0].mxu0
      %1069 = vmatprep.mubr.f32.mxu0 0.0
      %1070 = vmatmul.mubr.f32.gmra.mrb[0].mxu0 %v898
      %v1071 = vpop.f32.mrb[0].mxu0
      %v1072 = vadd.f32 %v968, %v1071
      %v1073 = vpop.f32.mrb[0].mxu0
      %1074 = vmatprep.mubr.f32.mxu0 0.0
      %1075 = vmatmul.mubr.f32.gmra.mrb[0].mxu0 %v900
      %v1076 = vpop.f32.mrb[0].mxu0
      %v1077 = vadd.f32 %v968, %v1076
      %v1078 = vpop.f32.mrb[0].mxu0
      %1079 = vmatprep.mubr.f32.mxu0 0.0
      %1080 = vmatmul.mubr.f32.gmra.mrb[0].mxu0 %v902
      %v1081 = vpop.f32.mrb[0].mxu0
      %v1082 = vadd.f32 %v968, %v1081
      %v1083 = vpop.f32.mrb[0].mxu0
      %1084 = vmatprep.mubr.f32.mxu0 0.0
      %1085 = vmatmul.mubr.f32.gmra.mrb[0].mxu0 %v904
      %v1086 = vpop.f32.mrb[0].mxu0
      %v1087 = vadd.f32 %v968, %v1086
      %v1088 = vpop.f32.mrb[0].mxu0
      %1089 = vmatprep.mubr.f32.mxu0 0.0
      %1090 = vmatmul.mubr.f32.gmra.mrb[0].mxu0 %v906
      %v1091 = vpop.f32.mrb[0].mxu0
      %v1092 = vadd.f32 %v968, %v1091
      %v1093 = vpop.f32.mrb[0].mxu0
      %1094 = vmatprep.mubr.f32.mxu0 0.0
      %1095 = vmatmul.mubr.f32.gmra.mrb[0].mxu0 %v908
      %v1096 = vpop.f32.mrb[0].mxu0
      %v1097 = vadd.f32 %v968, %v1096
      %v1098 = vpop.f32.mrb[0].mxu0
      %1099 = vmatprep.mubr.f32.mxu0 0.0
      %1100 = vmatmul.mubr.f32.gmra.mrb[0].mxu0 %v910
      %v1101 = vpop.f32.mrb[0].mxu0
      %v1102 = vadd.f32 %v968, %v1101
      %v1103 = vpop.f32.mrb[0].mxu0
      %1104 = vmatprep.mubr.f32.mxu0 0.0
      %1105 = vmatmul.mubr.f32.gmra.mrb[0].mxu0 %v912
      %v1106 = vpop.f32.mrb[0].mxu0
      %v1107 = vadd.f32 %v968, %v1106
      %v1108 = vpop.f32.mrb[0].mxu0
      %1109 = vmatprep.mubr.f32.mxu0 0.0
      %1110 = vmatmul.mubr.f32.gmra.mrb[0].mxu0 %v914
      %v1111 = vpop.f32.mrb[0].mxu0
      %v1112 = vadd.f32 %v968, %v1111
      %v1113 = vpop.f32.mrb[0].mxu0
      %1114 = vmatprep.mubr.f32.mxu0 0.0
      %1115 = vmatmul.mubr.f32.gmra.mrb[0].mxu0 %v916
      %v1116 = vpop.f32.mrb[0].mxu0
      %v1117 = vadd.f32 %v968, %v1116
      %v1118 = vpop.f32.mrb[0].mxu0
      %1119 = vmatprep.mubr.f32.mxu0 0.0
      %1120 = vmatmul.mubr.f32.gmra.mrb[0].mxu0 %v918
      %v1121 = vpop.f32.mrb[0].mxu0
      %v1122 = vadd.f32 %v968, %v1121
      %v1123 = vpop.f32.mrb[0].mxu0
      %1124 = vmatprep.mubr.f32.mxu0 0.0
      %1125 = vmatmul.mubr.f32.gmra.mrb[0].mxu0 %v920
      %v1126 = vpop.f32.mrb[0].mxu0
      %v1127 = vadd.f32 %v968, %v1126
      %v1128 = vpop.f32.mrb[0].mxu0
      %1129 = vmatprep.mubr.f32.mxu0 0.0
      %1130 = vmatmul.mubr.f32.gmra.mrb[0].mxu0 %v922
      %v1131 = vpop.f32.mrb[0].mxu0
      %v1132 = vadd.f32 %v968, %v1131
      %v1133 = vpop.f32.mrb[0].mxu0
      %1134 = vmatprep.mubr.f32.mxu0 0.0
      %1135 = vmatmul.mubr.f32.gmra.mrb[0].mxu0 %v924
      %v1136 = vpop.f32.mrb[0].mxu0
      %v1137 = vadd.f32 %v968, %v1136
      %v1138 = vpop.f32.mrb[0].mxu0
      %1139 = vmatprep.mubr.f32.mxu0 0.0
      %1140 = vmatmul.mubr.f32.gmra.mrb[0].mxu0 %v926
      %v1141 = vpop.f32.mrb[0].mxu0
      %v1142 = vadd.f32 %v968, %v1141
      %v1143 = vpop.f32.mrb[0].mxu0
      %1144 = vmatprep.mubr.f32.mxu0 0.0
      %1145 = vmatmul.mubr.f32.gmra.mrb[0].mxu0 %v928
      %v1146 = vpop.f32.mrb[0].mxu0
      %v1147 = vadd.f32 %v968, %v1146
      %v1148 = vpop.f32.mrb[0].mxu0
      %1149 = vmatprep.mubr.f32.mxu0 0.0
      %1150 = vmatmul.mubr.f32.gmra.mrb[0].mxu0 %v930
      %v1151 = vpop.f32.mrb[0].mxu0
      %v1152 = vadd.f32 %v968, %v1151
      %v1153 = vpop.f32.mrb[0].mxu0
      %1154 = vmatprep.mubr.f32.mxu0 0.0
      %1155 = vmatmul.mubr.f32.gmra.mrb[0].mxu0 %v932
      %v1156 = vpop.f32.mrb[0].mxu0
      %v1157 = vadd.f32 %v968, %v1156
      %v1158 = vpop.f32.mrb[0].mxu0
      %1159 = vmatprep.mubr.f32.mxu0 0.0
      %1160 = vmatmul.mubr.f32.gmra.mrb[0].mxu0 %v934
      %v1161 = vpop.f32.mrb[0].mxu0
      %v1162 = vadd.f32 %v968, %v1161
      %v1163 = vpop.f32.mrb[0].mxu0
      %1164 = vmatprep.mubr.f32.mxu0 0.0
      %1165 = vmatmul.mubr.f32.gmra.mrb[0].mxu0 %v936
      %v1166 = vpop.f32.mrb[0].mxu0
      %v1167 = vadd.f32 %v968, %v1166
      %v1168 = vpop.f32.mrb[0].mxu0
      %1169 = vmatprep.mubr.f32.mxu0 0.0
      %1170 = vmatmul.mubr.f32.gmra.mrb[0].mxu0 %v938
      %v1171 = vpop.f32.mrb[0].mxu0
      %v1172 = vadd.f32 %v968, %v1171
      %v1173 = vpop.f32.mrb[0].mxu0
      %1174 = vmatprep.mubr.f32.mxu0 0.0
      %1175 = vmatmul.mubr.f32.gmra.mrb[0].mxu0 %v940
      %v1176 = vpop.f32.mrb[0].mxu0
      %v1177 = vadd.f32 %v968, %v1176
      %v1178 = vpop.f32.mrb[0].mxu0
      %1179 = vmatprep.mubr.f32.mxu0 0.0
      %1180 = vmatmul.mubr.f32.gmra.mrb[0].mxu0 %v942
      %v1181 = vpop.f32.mrb[0].mxu0
      %v1182 = vadd.f32 %v968, %v1181
      %v1183 = vpop.f32.mrb[0].mxu0
      %1184 = vmatprep.mubr.f32.mxu0 0.0
      %1185 = vmatmul.mubr.f32.gmra.mrb[0].mxu0 %v944
      %v1186 = vpop.f32.mrb[0].mxu0
      %v1187 = vadd.f32 %v968, %v1186
      %v1188 = vpop.f32.mrb[0].mxu0
      %1189 = vmatprep.mubr.f32.mxu0 0.0
      %1190 = vmatmul.mubr.f32.gmra.mrb[0].mxu0 %v946
      %v1191 = vpop.f32.mrb[0].mxu0
      %v1192 = vadd.f32 %v968, %v1191
      %v1193 = vpop.f32.mrb[0].mxu0
      %1194 = vdwg.mxu0
      %v1195 = vxor.u32 %v1037, 2147483648
      %v1196 = vxor.u32 %v1042, 2147483648
      %v1197 = vxor.u32 %v1047, 2147483648
      %v1198 = vxor.u32 %v1052, 2147483648
      %v1199 = vxor.u32 %v1057, 2147483648
      %v1200 = vxor.u32 %v1062, 2147483648
      %v1201 = vxor.u32 %v1067, 2147483648
      %v1202 = vxor.u32 %v1072, 2147483648
      %v1203 = vxor.u32 %v1077, 2147483648
      %v1204 = vxor.u32 %v1082, 2147483648
      %v1205 = vxor.u32 %v1087, 2147483648
      %v1206 = vxor.u32 %v1092, 2147483648
      %v1207 = vxor.u32 %v1097, 2147483648
      %v1208 = vxor.u32 %v1102, 2147483648
      %v1209 = vxor.u32 %v1107, 2147483648
      %v1210 = vxor.u32 %v1112, 2147483648
      %v1211 = vxor.u32 %v1117, 2147483648
      %v1212 = vxor.u32 %v1122, 2147483648
      %v1213 = vxor.u32 %v1127, 2147483648
      %v1214 = vxor.u32 %v1132, 2147483648
      %v1215 = vxor.u32 %v1137, 2147483648
      %v1216 = vxor.u32 %v1142, 2147483648
      %v1217 = vxor.u32 %v1147, 2147483648
      %v1218 = vxor.u32 %v1152, 2147483648
      %v1219 = vxor.u32 %v1157, 2147483648
      %v1220 = vxor.u32 %v1162, 2147483648
      %v1221 = vxor.u32 %v1167, 2147483648
      %v1222 = vxor.u32 %v1172, 2147483648
      %v1223 = vxor.u32 %v1177, 2147483648
      %v1224 = vxor.u32 %v1182, 2147483648
      %v1225 = vxor.u32 %v1187, 2147483648
      %v1226 = vxor.u32 %v1192, 2147483648
      %v1227 = vmul.f32 %v1195, 1.442695
      %v1228 = vpow.pop %v1227
      %v1229 = vmul.f32 %v1196, 1.442695
      %v1230 = vpow.pop %v1229
      %v1231 = vmul.f32 %v1197, 1.442695
      %v1232 = vpow.pop %v1231
      %v1233 = vmul.f32 %v1198, 1.442695
      %v1234 = vpow.pop %v1233
      %v1235 = vmul.f32 %v1199, 1.442695
      %v1236 = vpow.pop %v1235
      %v1237 = vmul.f32 %v1200, 1.442695
      %v1238 = vpow.pop %v1237
      %v1239 = vmul.f32 %v1201, 1.442695
      %v1240 = vpow.pop %v1239
      %v1241 = vmul.f32 %v1202, 1.442695
      %v1242 = vpow.pop %v1241
      %v1243 = vmul.f32 %v1203, 1.442695
      %v1244 = vpow.pop %v1243
      %v1245 = vmul.f32 %v1204, 1.442695
      %v1246 = vpow.pop %v1245
      %v1247 = vmul.f32 %v1205, 1.442695
      %v1248 = vpow.pop %v1247
      %v1249 = vmul.f32 %v1206, 1.442695
      %v1250 = vpow.pop %v1249
      %v1251 = vmul.f32 %v1207, 1.442695
      %v1252 = vpow.pop %v1251
      %v1253 = vmul.f32 %v1208, 1.442695
      %v1254 = vpow.pop %v1253
      %v1255 = vmul.f32 %v1209, 1.442695
      %v1256 = vpow.pop %v1255
      %v1257 = vmul.f32 %v1210, 1.442695
      %v1258 = vpow.pop %v1257
      %v1259 = vmul.f32 %v1211, 1.442695
      %v1260 = vpow.pop %v1259
      %v1261 = vmul.f32 %v1212, 1.442695
      %v1262 = vpow.pop %v1261
      %v1263 = vmul.f32 %v1213, 1.442695
      %v1264 = vpow.pop %v1263
      %v1265 = vmul.f32 %v1214, 1.442695
      %v1266 = vpow.pop %v1265
      %v1267 = vmul.f32 %v1215, 1.442695
      %v1268 = vpow.pop %v1267
      %v1269 = vmul.f32 %v1216, 1.442695
      %v1270 = vpow.pop %v1269
      %v1271 = vmul.f32 %v1217, 1.442695
      %v1272 = vpow.pop %v1271
      %v1273 = vmul.f32 %v1218, 1.442695
      %v1274 = vpow.pop %v1273
      %v1275 = vmul.f32 %v1219, 1.442695
      %v1276 = vpow.pop %v1275
      %v1277 = vmul.f32 %v1220, 1.442695
      %v1278 = vpow.pop %v1277
      %v1279 = vmul.f32 %v1221, 1.442695
      %v1280 = vpow.pop %v1279
      %v1281 = vmul.f32 %v1222, 1.442695
      %v1282 = vpow.pop %v1281
      %v1283 = vmul.f32 %v1223, 1.442695
      %v1284 = vpow.pop %v1283
      %v1285 = vmul.f32 %v1224, 1.442695
      %v1286 = vpow.pop %v1285
      %v1287 = vmul.f32 %v1225, 1.442695
      %v1288 = vpow.pop %v1287
      %v1289 = vmul.f32 %v1226, 1.442695
      %v1290 = vpow.pop %v1289
      %v1291 = vadd.f32 %v1228, 1.0
      %v1292 = vadd.f32 %v1230, 1.0
      %v1293 = vadd.f32 %v1232, 1.0
      %v1294 = vadd.f32 %v1234, 1.0
      %v1295 = vadd.f32 %v1236, 1.0
      %v1296 = vadd.f32 %v1238, 1.0
      %v1297 = vadd.f32 %v1240, 1.0
      %v1298 = vadd.f32 %v1242, 1.0
      %v1299 = vadd.f32 %v1244, 1.0
      %v1300 = vadd.f32 %v1246, 1.0
      %v1301 = vadd.f32 %v1248, 1.0
      %v1302 = vadd.f32 %v1250, 1.0
      %v1303 = vadd.f32 %v1252, 1.0
      %v1304 = vadd.f32 %v1254, 1.0
      %v1305 = vadd.f32 %v1256, 1.0
      %v1306 = vadd.f32 %v1258, 1.0
      %v1307 = vadd.f32 %v1260, 1.0
      %v1308 = vadd.f32 %v1262, 1.0
      %v1309 = vadd.f32 %v1264, 1.0
      %v1310 = vadd.f32 %v1266, 1.0
      %v1311 = vadd.f32 %v1268, 1.0
      %v1312 = vadd.f32 %v1270, 1.0
      %v1313 = vadd.f32 %v1272, 1.0
      %v1314 = vadd.f32 %v1274, 1.0
      %v1315 = vadd.f32 %v1276, 1.0
      %v1316 = vadd.f32 %v1278, 1.0
      %v1317 = vadd.f32 %v1280, 1.0
      %v1318 = vadd.f32 %v1282, 1.0
      %v1319 = vadd.f32 %v1284, 1.0
      %v1320 = vadd.f32 %v1286, 1.0
      %v1321 = vadd.f32 %v1288, 1.0
      %v1322 = vadd.f32 %v1290, 1.0
      %v1323 = vrcp.pop %v1291
      %v1324 = vmul.f32 1.0, %v1323
      %v1325 = vrcp.pop %v1292
      %v1326 = vmul.f32 1.0, %v1325
      %v1327 = vrcp.pop %v1293
      %v1328 = vmul.f32 1.0, %v1327
      %v1329 = vrcp.pop %v1294
      %v1330 = vmul.f32 1.0, %v1329
      %v1331 = vrcp.pop %v1295
      %v1332 = vmul.f32 1.0, %v1331
      %v1333 = vrcp.pop %v1296
      %v1334 = vmul.f32 1.0, %v1333
      %v1335 = vrcp.pop %v1297
      %v1336 = vmul.f32 1.0, %v1335
      %v1337 = vrcp.pop %v1298
      %v1338 = vmul.f32 1.0, %v1337
      %v1339 = vrcp.pop %v1299
      %v1340 = vmul.f32 1.0, %v1339
      %v1341 = vrcp.pop %v1300
      %v1342 = vmul.f32 1.0, %v1341
      %v1343 = vrcp.pop %v1301
      %v1344 = vmul.f32 1.0, %v1343
      %v1345 = vrcp.pop %v1302
      %v1346 = vmul.f32 1.0, %v1345
      %v1347 = vrcp.pop %v1303
      %v1348 = vmul.f32 1.0, %v1347
      %v1349 = vrcp.pop %v1304
      %v1350 = vmul.f32 1.0, %v1349
      %v1351 = vrcp.pop %v1305
      %v1352 = vmul.f32 1.0, %v1351
      %v1353 = vrcp.pop %v1306
      %v1354 = vmul.f32 1.0, %v1353
      %v1355 = vrcp.pop %v1307
      %v1356 = vmul.f32 1.0, %v1355
      %v1357 = vrcp.pop %v1308
      %v1358 = vmul.f32 1.0, %v1357
      %v1359 = vrcp.pop %v1309
      %v1360 = vmul.f32 1.0, %v1359
      %v1361 = vrcp.pop %v1310
      %v1362 = vmul.f32 1.0, %v1361
      %v1363 = vrcp.pop %v1311
      %v1364 = vmul.f32 1.0, %v1363
      %v1365 = vrcp.pop %v1312
      %v1366 = vmul.f32 1.0, %v1365
      %v1367 = vrcp.pop %v1313
      %v1368 = vmul.f32 1.0, %v1367
      %v1369 = vrcp.pop %v1314
      %v1370 = vmul.f32 1.0, %v1369
      %v1371 = vrcp.pop %v1315
      %v1372 = vmul.f32 1.0, %v1371
      %v1373 = vrcp.pop %v1316
      %v1374 = vmul.f32 1.0, %v1373
      %v1375 = vrcp.pop %v1317
      %v1376 = vmul.f32 1.0, %v1375
      %v1377 = vrcp.pop %v1318
      %v1378 = vmul.f32 1.0, %v1377
      %v1379 = vrcp.pop %v1319
      %v1380 = vmul.f32 1.0, %v1379
      %v1381 = vrcp.pop %v1320
      %v1382 = vmul.f32 1.0, %v1381
      %v1383 = vrcp.pop %v1321
      %v1384 = vmul.f32 1.0, %v1383
      %v1385 = vrcp.pop %v1322
      %v1386 = vmul.f32 1.0, %v1385
      %v1387 = vld [vmem:[%s6] sm:$0xff]
      %v1388 = vld [vmem:[%s6 + $0x8] sm:$0xff]
      %v1389 = vld [vmem:[%s6 + $0x10] sm:$0xff]
      %v1390 = vld [vmem:[%s6 + $0x18] sm:$0xff]
      %v1391 = vld [vmem:[%s6 + $0x20] sm:$0xff]
      %v1392 = vld [vmem:[%s6 + $0x28] sm:$0xff]
      %v1393 = vld [vmem:[%s6 + $0x30] sm:$0xff]
      %v1394 = vld [vmem:[%s6 + $0x38] sm:$0xff]
      %v1395 = vld [vmem:[%s6 + $0x40] sm:$0xff]
      %v1396 = vld [vmem:[%s6 + $0x48] sm:$0xff]
      %v1397 = vld [vmem:[%s6 + $0x50] sm:$0xff]
      %v1398 = vld [vmem:[%s6 + $0x58] sm:$0xff]
      %v1399 = vld [vmem:[%s6 + $0x60] sm:$0xff]
      %v1400 = vld [vmem:[%s6 + $0x68] sm:$0xff]
      %v1401 = vld [vmem:[%s6 + $0x70] sm:$0xff]
      %v1402 = vld [vmem:[%s6 + $0x78] sm:$0xff]
      %v1403 = vld [vmem:[%s7] sm:$0x1]
      %v1405 = vlaneseq
      %v1406 = vshrl.u32 %v1405, 7
      %v1407 = vsub.s32 0, %v1406
      %v1408 = vrot.slane %v1403, %v1407
      %1410 = vmatprep.subr.mxu0 0.0
      %1411 = vmatpush1.msra.mxu0 %v1387
      %1412 = vmatprep.subr.mxu0 0.0
      %1413 = vmatpush1.msra.mxu0 %v1388
      %1414 = vmatprep.subr.mxu0 0.0
      %1415 = vmatpush1.msra.mxu0 %v1389
      %1416 = vmatprep.subr.mxu0 0.0
      %1417 = vmatpush1.msra.mxu0 %v1390
      %1418 = vmatprep.subr.mxu0 0.0
      %1419 = vmatpush1.msra.mxu0 %v1391
      %1420 = vmatprep.subr.mxu0 0.0
      %1421 = vmatpush1.msra.mxu0 %v1392
      %1422 = vmatprep.subr.mxu0 0.0
      %1423 = vmatpush1.msra.mxu0 %v1393
      %1424 = vmatprep.subr.mxu0 0.0
      %1425 = vmatpush1.msra.mxu0 %v1394
      %1426 = vmatprep.subr.mxu0 0.0
      %1427 = vmatpush1.msra.mxu0 %v1395
      %1428 = vmatprep.subr.mxu0 0.0
      %1429 = vmatpush1.msra.mxu0 %v1396
      %1430 = vmatprep.subr.mxu0 0.0
      %1431 = vmatpush1.msra.mxu0 %v1397
      %1432 = vmatprep.subr.mxu0 0.0
      %1433 = vmatpush1.msra.mxu0 %v1398
      %1434 = vmatprep.subr.mxu0 0.0
      %1435 = vmatpush1.msra.mxu0 %v1399
      %1436 = vmatprep.subr.mxu0 0.0
      %1437 = vmatpush1.msra.mxu0 %v1400
      %1438 = vmatprep.subr.mxu0 0.0
      %1439 = vmatpush1.msra.mxu0 %v1401
      %1440 = vmatprep.subr.mxu0 0.0
      %1441 = vmatpush1.msra.mxu0 %v1402
      %1442 = vmatprep.subr.mxu0 0.0
      %1443 = vmatpush1.msra.mxu0 0.0
      %1444 = vmatprep.subr.mxu0 0.0
      %1445 = vmatpush1.msra.mxu0 0.0
      %1446 = vmatprep.subr.mxu0 0.0
      %1447 = vmatpush1.msra.mxu0 0.0
      %1448 = vmatprep.subr.mxu0 0.0
      %1449 = vmatpush1.msra.mxu0 0.0
      %1450 = vmatprep.subr.mxu0 0.0
      %1451 = vmatpush1.msra.mxu0 0.0
      %1452 = vmatprep.subr.mxu0 0.0
      %1453 = vmatpush1.msra.mxu0 0.0
      %1454 = vmatprep.subr.mxu0 0.0
      %1455 = vmatpush1.msra.mxu0 0.0
      %1456 = vmatprep.subr.mxu0 0.0
      %1457 = vmatpush1.msra.mxu0 0.0
      %1458 = vmatprep.subr.mxu0 0.0
      %1459 = vmatpush1.msra.mxu0 0.0
      %1460 = vmatprep.subr.mxu0 0.0
      %1461 = vmatpush1.msra.mxu0 0.0
      %1462 = vmatprep.subr.mxu0 0.0
      %1463 = vmatpush1.msra.mxu0 0.0
      %1464 = vmatprep.subr.mxu0 0.0
      %1465 = vmatpush1.msra.mxu0 0.0
      %1466 = vmatprep.subr.mxu0 0.0
      %1467 = vmatpush1.msra.mxu0 0.0
      %1468 = vmatprep.subr.mxu0 0.0
      %1469 = vmatpush1.msra.mxu0 0.0
      %1470 = vmatprep.subr.mxu0 0.0
      %1471 = vmatpush1.msra.mxu0 0.0
      %1472 = vmatprep.subr.mxu0 0.0
      %1473 = vmatpush1.msra.mxu0 0.0
      %1474 = vmatprep.mubr.f32.mxu0 0.0
      %1475 = vmatmul.mubr.f32.gmra.mrb[0].mxu0 %v1324
      %v1476 = vpop.f32.mrb[0].mxu0
      %v1477 = vadd.f32 %v1408, %v1476
      %v1478 = vpop.f32.mrb[0].mxu0
      %1479 = vmatprep.mubr.f32.mxu0 0.0
      %1480 = vmatmul.mubr.f32.gmra.mrb[0].mxu0 %v1326
      %v1481 = vpop.f32.mrb[0].mxu0
      %v1482 = vadd.f32 %v1408, %v1481
      %v1483 = vpop.f32.mrb[0].mxu0
      %1484 = vmatprep.mubr.f32.mxu0 0.0
      %1485 = vmatmul.mubr.f32.gmra.mrb[0].mxu0 %v1328
      %v1486 = vpop.f32.mrb[0].mxu0
      %v1487 = vadd.f32 %v1408, %v1486
      %v1488 = vpop.f32.mrb[0].mxu0
      %1489 = vmatprep.mubr.f32.mxu0 0.0
      %1490 = vmatmul.mubr.f32.gmra.mrb[0].mxu0 %v1330
      %v1491 = vpop.f32.mrb[0].mxu0
      %v1492 = vadd.f32 %v1408, %v1491
      %v1493 = vpop.f32.mrb[0].mxu0
      %1494 = vmatprep.mubr.f32.mxu0 0.0
      %1495 = vmatmul.mubr.f32.gmra.mrb[0].mxu0 %v1332
      %v1496 = vpop.f32.mrb[0].mxu0
      %v1497 = vadd.f32 %v1408, %v1496
      %v1498 = vpop.f32.mrb[0].mxu0
      %1499 = vmatprep.mubr.f32.mxu0 0.0
      %1500 = vmatmul.mubr.f32.gmra.mrb[0].mxu0 %v1334
      %v1501 = vpop.f32.mrb[0].mxu0
      %v1502 = vadd.f32 %v1408, %v1501
      %v1503 = vpop.f32.mrb[0].mxu0
      %1504 = vmatprep.mubr.f32.mxu0 0.0
      %1505 = vmatmul.mubr.f32.gmra.mrb[0].mxu0 %v1336
      %v1506 = vpop.f32.mrb[0].mxu0
      %v1507 = vadd.f32 %v1408, %v1506
      %v1508 = vpop.f32.mrb[0].mxu0
      %1509 = vmatprep.mubr.f32.mxu0 0.0
      %1510 = vmatmul.mubr.f32.gmra.mrb[0].mxu0 %v1338
      %v1511 = vpop.f32.mrb[0].mxu0
      %v1512 = vadd.f32 %v1408, %v1511
      %v1513 = vpop.f32.mrb[0].mxu0
      %1514 = vmatprep.mubr.f32.mxu0 0.0
      %1515 = vmatmul.mubr.f32.gmra.mrb[0].mxu0 %v1340
      %v1516 = vpop.f32.mrb[0].mxu0
      %v1517 = vadd.f32 %v1408, %v1516
      %v1518 = vpop.f32.mrb[0].mxu0
      %1519 = vmatprep.mubr.f32.mxu0 0.0
      %1520 = vmatmul.mubr.f32.gmra.mrb[0].mxu0 %v1342
      %v1521 = vpop.f32.mrb[0].mxu0
      %v1522 = vadd.f32 %v1408, %v1521
      %v1523 = vpop.f32.mrb[0].mxu0
      %1524 = vmatprep.mubr.f32.mxu0 0.0
      %1525 = vmatmul.mubr.f32.gmra.mrb[0].mxu0 %v1344
      %v1526 = vpop.f32.mrb[0].mxu0
      %v1527 = vadd.f32 %v1408, %v1526
      %v1528 = vpop.f32.mrb[0].mxu0
      %1529 = vmatprep.mubr.f32.mxu0 0.0
      %1530 = vmatmul.mubr.f32.gmra.mrb[0].mxu0 %v1346
      %v1531 = vpop.f32.mrb[0].mxu0
      %v1532 = vadd.f32 %v1408, %v1531
      %v1533 = vpop.f32.mrb[0].mxu0
      %1534 = vmatprep.mubr.f32.mxu0 0.0
      %1535 = vmatmul.mubr.f32.gmra.mrb[0].mxu0 %v1348
      %v1536 = vpop.f32.mrb[0].mxu0
      %v1537 = vadd.f32 %v1408, %v1536
      %v1538 = vpop.f32.mrb[0].mxu0
      %1539 = vmatprep.mubr.f32.mxu0 0.0
      %1540 = vmatmul.mubr.f32.gmra.mrb[0].mxu0 %v1350
      %v1541 = vpop.f32.mrb[0].mxu0
      %v1542 = vadd.f32 %v1408, %v1541
      %v1543 = vpop.f32.mrb[0].mxu0
      %1544 = vmatprep.mubr.f32.mxu0 0.0
      %1545 = vmatmul.mubr.f32.gmra.mrb[0].mxu0 %v1352
      %v1546 = vpop.f32.mrb[0].mxu0
      %v1547 = vadd.f32 %v1408, %v1546
      %v1548 = vpop.f32.mrb[0].mxu0
      %1549 = vmatprep.mubr.f32.mxu0 0.0
      %1550 = vmatmul.mubr.f32.gmra.mrb[0].mxu0 %v1354
      %v1551 = vpop.f32.mrb[0].mxu0
      %v1552 = vadd.f32 %v1408, %v1551
      %v1553 = vpop.f32.mrb[0].mxu0
      %1554 = vmatprep.mubr.f32.mxu0 0.0
      %1555 = vmatmul.mubr.f32.gmra.mrb[0].mxu0 %v1356
      %v1556 = vpop.f32.mrb[0].mxu0
      %v1557 = vadd.f32 %v1408, %v1556
      %v1558 = vpop.f32.mrb[0].mxu0
      %1559 = vmatprep.mubr.f32.mxu0 0.0
      %1560 = vmatmul.mubr.f32.gmra.mrb[0].mxu0 %v1358
      %v1561 = vpop.f32.mrb[0].mxu0
      %v1562 = vadd.f32 %v1408, %v1561
      %v1563 = vpop.f32.mrb[0].mxu0
      %1564 = vmatprep.mubr.f32.mxu0 0.0
      %1565 = vmatmul.mubr.f32.gmra.mrb[0].mxu0 %v1360
      %v1566 = vpop.f32.mrb[0].mxu0
      %v1567 = vadd.f32 %v1408, %v1566
      %v1568 = vpop.f32.mrb[0].mxu0
      %1569 = vmatprep.mubr.f32.mxu0 0.0
      %1570 = vmatmul.mubr.f32.gmra.mrb[0].mxu0 %v1362
      %v1571 = vpop.f32.mrb[0].mxu0
      %v1572 = vadd.f32 %v1408, %v1571
      %v1573 = vpop.f32.mrb[0].mxu0
      %1574 = vmatprep.mubr.f32.mxu0 0.0
      %1575 = vmatmul.mubr.f32.gmra.mrb[0].mxu0 %v1364
      %v1576 = vpop.f32.mrb[0].mxu0
      %v1577 = vadd.f32 %v1408, %v1576
      %v1578 = vpop.f32.mrb[0].mxu0
      %1579 = vmatprep.mubr.f32.mxu0 0.0
      %1580 = vmatmul.mubr.f32.gmra.mrb[0].mxu0 %v1366
      %v1581 = vpop.f32.mrb[0].mxu0
      %v1582 = vadd.f32 %v1408, %v1581
      %v1583 = vpop.f32.mrb[0].mxu0
      %1584 = vmatprep.mubr.f32.mxu0 0.0
      %1585 = vmatmul.mubr.f32.gmra.mrb[0].mxu0 %v1368
      %v1586 = vpop.f32.mrb[0].mxu0
      %v1587 = vadd.f32 %v1408, %v1586
      %v1588 = vpop.f32.mrb[0].mxu0
      %1589 = vmatprep.mubr.f32.mxu0 0.0
      %1590 = vmatmul.mubr.f32.gmra.mrb[0].mxu0 %v1370
      %v1591 = vpop.f32.mrb[0].mxu0
      %v1592 = vadd.f32 %v1408, %v1591
      %v1593 = vpop.f32.mrb[0].mxu0
      %1594 = vmatprep.mubr.f32.mxu0 0.0
      %1595 = vmatmul.mubr.f32.gmra.mrb[0].mxu0 %v1372
      %v1596 = vpop.f32.mrb[0].mxu0
      %v1597 = vadd.f32 %v1408, %v1596
      %v1598 = vpop.f32.mrb[0].mxu0
      %1599 = vmatprep.mubr.f32.mxu0 0.0
      %1600 = vmatmul.mubr.f32.gmra.mrb[0].mxu0 %v1374
      %v1601 = vpop.f32.mrb[0].mxu0
      %v1602 = vadd.f32 %v1408, %v1601
      %v1603 = vpop.f32.mrb[0].mxu0
      %1604 = vmatprep.mubr.f32.mxu0 0.0
      %1605 = vmatmul.mubr.f32.gmra.mrb[0].mxu0 %v1376
      %v1606 = vpop.f32.mrb[0].mxu0
      %v1607 = vadd.f32 %v1408, %v1606
      %v1608 = vpop.f32.mrb[0].mxu0
      %1609 = vmatprep.mubr.f32.mxu0 0.0
      %1610 = vmatmul.mubr.f32.gmra.mrb[0].mxu0 %v1378
      %v1611 = vpop.f32.mrb[0].mxu0
      %v1612 = vadd.f32 %v1408, %v1611
      %v1613 = vpop.f32.mrb[0].mxu0
      %1614 = vmatprep.mubr.f32.mxu0 0.0
      %1615 = vmatmul.mubr.f32.gmra.mrb[0].mxu0 %v1380
      %v1616 = vpop.f32.mrb[0].mxu0
      %v1617 = vadd.f32 %v1408, %v1616
      %v1618 = vpop.f32.mrb[0].mxu0
      %1619 = vmatprep.mubr.f32.mxu0 0.0
      %1620 = vmatmul.mubr.f32.gmra.mrb[0].mxu0 %v1382
      %v1621 = vpop.f32.mrb[0].mxu0
      %v1622 = vadd.f32 %v1408, %v1621
      %v1623 = vpop.f32.mrb[0].mxu0
      %1624 = vmatprep.mubr.f32.mxu0 0.0
      %1625 = vmatmul.mubr.f32.gmra.mrb[0].mxu0 %v1384
      %v1626 = vpop.f32.mrb[0].mxu0
      %v1627 = vadd.f32 %v1408, %v1626
      %v1628 = vpop.f32.mrb[0].mxu0
      %1629 = vmatprep.mubr.f32.mxu0 0.0
      %1630 = vmatmul.mubr.f32.gmra.mrb[0].mxu0 %v1386
      %v1631 = vpop.f32.mrb[0].mxu0
      %v1632 = vadd.f32 %v1408, %v1631
      %v1633 = vpop.f32.mrb[0].mxu0
      %1634 = vdwg.mxu0
      %v1635 = vxor.u32 %v1477, 2147483648
      %v1636 = vxor.u32 %v1482, 2147483648
      %v1637 = vxor.u32 %v1487, 2147483648
      %v1638 = vxor.u32 %v1492, 2147483648
      %v1639 = vxor.u32 %v1497, 2147483648
      %v1640 = vxor.u32 %v1502, 2147483648
      %v1641 = vxor.u32 %v1507, 2147483648
      %v1642 = vxor.u32 %v1512, 2147483648
      %v1643 = vxor.u32 %v1517, 2147483648
      %v1644 = vxor.u32 %v1522, 2147483648
      %v1645 = vxor.u32 %v1527, 2147483648
      %v1646 = vxor.u32 %v1532, 2147483648
      %v1647 = vxor.u32 %v1537, 2147483648
      %v1648 = vxor.u32 %v1542, 2147483648
      %v1649 = vxor.u32 %v1547, 2147483648
      %v1650 = vxor.u32 %v1552, 2147483648
      %v1651 = vxor.u32 %v1557, 2147483648
      %v1652 = vxor.u32 %v1562, 2147483648
      %v1653 = vxor.u32 %v1567, 2147483648
      %v1654 = vxor.u32 %v1572, 2147483648
      %v1655 = vxor.u32 %v1577, 2147483648
      %v1656 = vxor.u32 %v1582, 2147483648
      %v1657 = vxor.u32 %v1587, 2147483648
      %v1658 = vxor.u32 %v1592, 2147483648
      %v1659 = vxor.u32 %v1597, 2147483648
      %v1660 = vxor.u32 %v1602, 2147483648
      %v1661 = vxor.u32 %v1607, 2147483648
      %v1662 = vxor.u32 %v1612, 2147483648
      %v1663 = vxor.u32 %v1617, 2147483648
      %v1664 = vxor.u32 %v1622, 2147483648
      %v1665 = vxor.u32 %v1627, 2147483648
      %v1666 = vxor.u32 %v1632, 2147483648
      %v1667 = vmul.f32 %v1635, 1.442695
      %v1668 = vpow.pop %v1667
      %v1669 = vmul.f32 %v1636, 1.442695
      %v1670 = vpow.pop %v1669
      %v1671 = vmul.f32 %v1637, 1.442695
      %v1672 = vpow.pop %v1671
      %v1673 = vmul.f32 %v1638, 1.442695
      %v1674 = vpow.pop %v1673
      %v1675 = vmul.f32 %v1639, 1.442695
      %v1676 = vpow.pop %v1675
      %v1677 = vmul.f32 %v1640, 1.442695
      %v1678 = vpow.pop %v1677
      %v1679 = vmul.f32 %v1641, 1.442695
      %v1680 = vpow.pop %v1679
      %v1681 = vmul.f32 %v1642, 1.442695
      %v1682 = vpow.pop %v1681
      %v1683 = vmul.f32 %v1643, 1.442695
      %v1684 = vpow.pop %v1683
      %v1685 = vmul.f32 %v1644, 1.442695
      %v1686 = vpow.pop %v1685
      %v1687 = vmul.f32 %v1645, 1.442695
      %v1688 = vpow.pop %v1687
      %v1689 = vmul.f32 %v1646, 1.442695
      %v1690 = vpow.pop %v1689
      %v1691 = vmul.f32 %v1647, 1.442695
      %v1692 = vpow.pop %v1691
      %v1693 = vmul.f32 %v1648, 1.442695
      %v1694 = vpow.pop %v1693
      %v1695 = vmul.f32 %v1649, 1.442695
      %v1696 = vpow.pop %v1695
      %v1697 = vmul.f32 %v1650, 1.442695
      %v1698 = vpow.pop %v1697
      %v1699 = vmul.f32 %v1651, 1.442695
      %v1700 = vpow.pop %v1699
      %v1701 = vmul.f32 %v1652, 1.442695
      %v1702 = vpow.pop %v1701
      %v1703 = vmul.f32 %v1653, 1.442695
      %v1704 = vpow.pop %v1703
      %v1705 = vmul.f32 %v1654, 1.442695
      %v1706 = vpow.pop %v1705
      %v1707 = vmul.f32 %v1655, 1.442695
      %v1708 = vpow.pop %v1707
      %v1709 = vmul.f32 %v1656, 1.442695
      %v1710 = vpow.pop %v1709
      %v1711 = vmul.f32 %v1657, 1.442695
      %v1712 = vpow.pop %v1711
      %v1713 = vmul.f32 %v1658, 1.442695
      %v1714 = vpow.pop %v1713
      %v1715 = vmul.f32 %v1659, 1.442695
      %v1716 = vpow.pop %v1715
      %v1717 = vmul.f32 %v1660, 1.442695
      %v1718 = vpow.pop %v1717
      %v1719 = vmul.f32 %v1661, 1.442695
      %v1720 = vpow.pop %v1719
      %v1721 = vmul.f32 %v1662, 1.442695
      %v1722 = vpow.pop %v1721
      %v1723 = vmul.f32 %v1663, 1.442695
      %v1724 = vpow.pop %v1723
      %v1725 = vmul.f32 %v1664, 1.442695
      %v1726 = vpow.pop %v1725
      %v1727 = vmul.f32 %v1665, 1.442695
      %v1728 = vpow.pop %v1727
      %v1729 = vmul.f32 %v1666, 1.442695
      %v1730 = vpow.pop %v1729
      %v1731 = vadd.f32 %v1668, 1.0
      %v1732 = vadd.f32 %v1670, 1.0
      %v1733 = vadd.f32 %v1672, 1.0
      %v1734 = vadd.f32 %v1674, 1.0
      %v1735 = vadd.f32 %v1676, 1.0
      %v1736 = vadd.f32 %v1678, 1.0
      %v1737 = vadd.f32 %v1680, 1.0
      %v1738 = vadd.f32 %v1682, 1.0
      %v1739 = vadd.f32 %v1684, 1.0
      %v1740 = vadd.f32 %v1686, 1.0
      %v1741 = vadd.f32 %v1688, 1.0
      %v1742 = vadd.f32 %v1690, 1.0
      %v1743 = vadd.f32 %v1692, 1.0
      %v1744 = vadd.f32 %v1694, 1.0
      %v1745 = vadd.f32 %v1696, 1.0
      %v1746 = vadd.f32 %v1698, 1.0
      %v1747 = vadd.f32 %v1700, 1.0
      %v1748 = vadd.f32 %v1702, 1.0
      %v1749 = vadd.f32 %v1704, 1.0
      %v1750 = vadd.f32 %v1706, 1.0
      %v1751 = vadd.f32 %v1708, 1.0
      %v1752 = vadd.f32 %v1710, 1.0
      %v1753 = vadd.f32 %v1712, 1.0
      %v1754 = vadd.f32 %v1714, 1.0
      %v1755 = vadd.f32 %v1716, 1.0
      %v1756 = vadd.f32 %v1718, 1.0
      %v1757 = vadd.f32 %v1720, 1.0
      %v1758 = vadd.f32 %v1722, 1.0
      %v1759 = vadd.f32 %v1724, 1.0
      %v1760 = vadd.f32 %v1726, 1.0
      %v1761 = vadd.f32 %v1728, 1.0
      %v1762 = vadd.f32 %v1730, 1.0
      %v1763 = vrcp.pop %v1731
      %v1764 = vmul.f32 1.0, %v1763
      %v1765 = vrcp.pop %v1732
      %v1766 = vmul.f32 1.0, %v1765
      %v1767 = vrcp.pop %v1733
      %v1768 = vmul.f32 1.0, %v1767
      %v1769 = vrcp.pop %v1734
      %v1770 = vmul.f32 1.0, %v1769
      %v1771 = vrcp.pop %v1735
      %v1772 = vmul.f32 1.0, %v1771
      %v1773 = vrcp.pop %v1736
      %v1774 = vmul.f32 1.0, %v1773
      %v1775 = vrcp.pop %v1737
      %v1776 = vmul.f32 1.0, %v1775
      %v1777 = vrcp.pop %v1738
      %v1778 = vmul.f32 1.0, %v1777
      %v1779 = vrcp.pop %v1739
      %v1780 = vmul.f32 1.0, %v1779
      %v1781 = vrcp.pop %v1740
      %v1782 = vmul.f32 1.0, %v1781
      %v1783 = vrcp.pop %v1741
      %v1784 = vmul.f32 1.0, %v1783
      %v1785 = vrcp.pop %v1742
      %v1786 = vmul.f32 1.0, %v1785
      %v1787 = vrcp.pop %v1743
      %v1788 = vmul.f32 1.0, %v1787
      %v1789 = vrcp.pop %v1744
      %v1790 = vmul.f32 1.0, %v1789
      %v1791 = vrcp.pop %v1745
      %v1792 = vmul.f32 1.0, %v1791
      %v1793 = vrcp.pop %v1746
      %v1794 = vmul.f32 1.0, %v1793
      %v1795 = vrcp.pop %v1747
      %v1796 = vmul.f32 1.0, %v1795
      %v1797 = vrcp.pop %v1748
      %v1798 = vmul.f32 1.0, %v1797
      %v1799 = vrcp.pop %v1749
      %v1800 = vmul.f32 1.0, %v1799
      %v1801 = vrcp.pop %v1750
      %v1802 = vmul.f32 1.0, %v1801
      %v1803 = vrcp.pop %v1751
      %v1804 = vmul.f32 1.0, %v1803
      %v1805 = vrcp.pop %v1752
      %v1806 = vmul.f32 1.0, %v1805
      %v1807 = vrcp.pop %v1753
      %v1808 = vmul.f32 1.0, %v1807
      %v1809 = vrcp.pop %v1754
      %v1810 = vmul.f32 1.0, %v1809
      %v1811 = vrcp.pop %v1755
      %v1812 = vmul.f32 1.0, %v1811
      %v1813 = vrcp.pop %v1756
      %v1814 = vmul.f32 1.0, %v1813
      %v1815 = vrcp.pop %v1757
      %v1816 = vmul.f32 1.0, %v1815
      %v1817 = vrcp.pop %v1758
      %v1818 = vmul.f32 1.0, %v1817
      %v1819 = vrcp.pop %v1759
      %v1820 = vmul.f32 1.0, %v1819
      %v1821 = vrcp.pop %v1760
      %v1822 = vmul.f32 1.0, %v1821
      %v1823 = vrcp.pop %v1761
      %v1824 = vmul.f32 1.0, %v1823
      %v1825 = vrcp.pop %v1762
      %v1826 = vmul.f32 1.0, %v1825
      %v1827 = vld [vmem:[%s8] sm:$0xff]
      %v1828 = vld [vmem:[%s8 + $0x8] sm:$0xff]
      %v1829 = vld [vmem:[%s8 + $0x10] sm:$0xff]
      %v1830 = vld [vmem:[%s8 + $0x18] sm:$0xff]
      %v1831 = vld [vmem:[%s8 + $0x20] sm:$0xff]
      %v1832 = vld [vmem:[%s8 + $0x28] sm:$0xff]
      %v1833 = vld [vmem:[%s8 + $0x30] sm:$0xff]
      %v1834 = vld [vmem:[%s8 + $0x38] sm:$0xff]
      %v1835 = vld [vmem:[%s8 + $0x40] sm:$0xff]
      %v1836 = vld [vmem:[%s8 + $0x48] sm:$0xff]
      %v1837 = vld [vmem:[%s8 + $0x50] sm:$0xff]
      %v1838 = vld [vmem:[%s8 + $0x58] sm:$0xff]
      %v1839 = vld [vmem:[%s8 + $0x60] sm:$0xff]
      %v1840 = vld [vmem:[%s8 + $0x68] sm:$0xff]
      %v1841 = vld [vmem:[%s8 + $0x70] sm:$0xff]
      %v1842 = vld [vmem:[%s8 + $0x78] sm:$0xff]
      %v1843 = vld [vmem:[%s9] sm:$0x1]
      %v1845 = vlaneseq
      %v1846 = vshrl.u32 %v1845, 7
      %v1847 = vsub.s32 0, %v1846
      %v1848 = vrot.slane %v1843, %v1847
      %1850 = vmatprep.subr.mxu0 0.0
      %1851 = vmatpush1.msra.mxu0 %v1827
      %1852 = vmatprep.subr.mxu0 0.0
      %1853 = vmatpush1.msra.mxu0 %v1828
      %1854 = vmatprep.subr.mxu0 0.0
      %1855 = vmatpush1.msra.mxu0 %v1829
      %1856 = vmatprep.subr.mxu0 0.0
      %1857 = vmatpush1.msra.mxu0 %v1830
      %1858 = vmatprep.subr.mxu0 0.0
      %1859 = vmatpush1.msra.mxu0 %v1831
      %1860 = vmatprep.subr.mxu0 0.0
      %1861 = vmatpush1.msra.mxu0 %v1832
      %1862 = vmatprep.subr.mxu0 0.0
      %1863 = vmatpush1.msra.mxu0 %v1833
      %1864 = vmatprep.subr.mxu0 0.0
      %1865 = vmatpush1.msra.mxu0 %v1834
      %1866 = vmatprep.subr.mxu0 0.0
      %1867 = vmatpush1.msra.mxu0 %v1835
      %1868 = vmatprep.subr.mxu0 0.0
      %1869 = vmatpush1.msra.mxu0 %v1836
      %1870 = vmatprep.subr.mxu0 0.0
      %1871 = vmatpush1.msra.mxu0 %v1837
      %1872 = vmatprep.subr.mxu0 0.0
      %1873 = vmatpush1.msra.mxu0 %v1838
      %1874 = vmatprep.subr.mxu0 0.0
      %1875 = vmatpush1.msra.mxu0 %v1839
      %1876 = vmatprep.subr.mxu0 0.0
      %1877 = vmatpush1.msra.mxu0 %v1840
      %1878 = vmatprep.subr.mxu0 0.0
      %1879 = vmatpush1.msra.mxu0 %v1841
      %1880 = vmatprep.subr.mxu0 0.0
      %1881 = vmatpush1.msra.mxu0 %v1842
      %1882 = vmatprep.subr.mxu0 0.0
      %1883 = vmatpush1.msra.mxu0 0.0
      %1884 = vmatprep.subr.mxu0 0.0
      %1885 = vmatpush1.msra.mxu0 0.0
      %1886 = vmatprep.subr.mxu0 0.0
      %1887 = vmatpush1.msra.mxu0 0.0
      %1888 = vmatprep.subr.mxu0 0.0
      %1889 = vmatpush1.msra.mxu0 0.0
      %1890 = vmatprep.subr.mxu0 0.0
      %1891 = vmatpush1.msra.mxu0 0.0
      %1892 = vmatprep.subr.mxu0 0.0
      %1893 = vmatpush1.msra.mxu0 0.0
      %1894 = vmatprep.subr.mxu0 0.0
      %1895 = vmatpush1.msra.mxu0 0.0
      %1896 = vmatprep.subr.mxu0 0.0
      %1897 = vmatpush1.msra.mxu0 0.0
      %1898 = vmatprep.subr.mxu0 0.0
      %1899 = vmatpush1.msra.mxu0 0.0
      %1900 = vmatprep.subr.mxu0 0.0
      %1901 = vmatpush1.msra.mxu0 0.0
      %1902 = vmatprep.subr.mxu0 0.0
      %1903 = vmatpush1.msra.mxu0 0.0
      %1904 = vmatprep.subr.mxu0 0.0
      %1905 = vmatpush1.msra.mxu0 0.0
      %1906 = vmatprep.subr.mxu0 0.0
      %1907 = vmatpush1.msra.mxu0 0.0
      %1908 = vmatprep.subr.mxu0 0.0
      %1909 = vmatpush1.msra.mxu0 0.0
      %1910 = vmatprep.subr.mxu0 0.0
      %1911 = vmatpush1.msra.mxu0 0.0
      %1912 = vmatprep.subr.mxu0 0.0
      %1913 = vmatpush1.msra.mxu0 0.0
      %1914 = vmatprep.mubr.f32.mxu0 0.0
      %1915 = vmatmul.mubr.f32.gmra.mrb[0].mxu0 %v1764
      %v1916 = vpop.f32.mrb[0].mxu0
      %v1917 = vadd.f32 %v1848, %v1916
      %v1918 = vpop.f32.mrb[0].mxu0
      %1919 = vmatprep.mubr.f32.mxu0 0.0
      %1920 = vmatmul.mubr.f32.gmra.mrb[0].mxu0 %v1766
      %v1921 = vpop.f32.mrb[0].mxu0
      %v1922 = vadd.f32 %v1848, %v1921
      %v1923 = vpop.f32.mrb[0].mxu0
      %1924 = vmatprep.mubr.f32.mxu0 0.0
      %1925 = vmatmul.mubr.f32.gmra.mrb[0].mxu0 %v1768
      %v1926 = vpop.f32.mrb[0].mxu0
      %v1927 = vadd.f32 %v1848, %v1926
      %v1928 = vpop.f32.mrb[0].mxu0
      %1929 = vmatprep.mubr.f32.mxu0 0.0
      %1930 = vmatmul.mubr.f32.gmra.mrb[0].mxu0 %v1770
      %v1931 = vpop.f32.mrb[0].mxu0
      %v1932 = vadd.f32 %v1848, %v1931
      %v1933 = vpop.f32.mrb[0].mxu0
      %1934 = vmatprep.mubr.f32.mxu0 0.0
      %1935 = vmatmul.mubr.f32.gmra.mrb[0].mxu0 %v1772
      %v1936 = vpop.f32.mrb[0].mxu0
      %v1937 = vadd.f32 %v1848, %v1936
      %v1938 = vpop.f32.mrb[0].mxu0
      %1939 = vmatprep.mubr.f32.mxu0 0.0
      %1940 = vmatmul.mubr.f32.gmra.mrb[0].mxu0 %v1774
      %v1941 = vpop.f32.mrb[0].mxu0
      %v1942 = vadd.f32 %v1848, %v1941
      %v1943 = vpop.f32.mrb[0].mxu0
      %1944 = vmatprep.mubr.f32.mxu0 0.0
      %1945 = vmatmul.mubr.f32.gmra.mrb[0].mxu0 %v1776
      %v1946 = vpop.f32.mrb[0].mxu0
      %v1947 = vadd.f32 %v1848, %v1946
      %v1948 = vpop.f32.mrb[0].mxu0
      %1949 = vmatprep.mubr.f32.mxu0 0.0
      %1950 = vmatmul.mubr.f32.gmra.mrb[0].mxu0 %v1778
      %v1951 = vpop.f32.mrb[0].mxu0
      %v1952 = vadd.f32 %v1848, %v1951
      %v1953 = vpop.f32.mrb[0].mxu0
      %1954 = vmatprep.mubr.f32.mxu0 0.0
      %1955 = vmatmul.mubr.f32.gmra.mrb[0].mxu0 %v1780
      %v1956 = vpop.f32.mrb[0].mxu0
      %v1957 = vadd.f32 %v1848, %v1956
      %v1958 = vpop.f32.mrb[0].mxu0
      %1959 = vmatprep.mubr.f32.mxu0 0.0
      %1960 = vmatmul.mubr.f32.gmra.mrb[0].mxu0 %v1782
      %v1961 = vpop.f32.mrb[0].mxu0
      %v1962 = vadd.f32 %v1848, %v1961
      %v1963 = vpop.f32.mrb[0].mxu0
      %1964 = vmatprep.mubr.f32.mxu0 0.0
      %1965 = vmatmul.mubr.f32.gmra.mrb[0].mxu0 %v1784
      %v1966 = vpop.f32.mrb[0].mxu0
      %v1967 = vadd.f32 %v1848, %v1966
      %v1968 = vpop.f32.mrb[0].mxu0
      %1969 = vmatprep.mubr.f32.mxu0 0.0
      %1970 = vmatmul.mubr.f32.gmra.mrb[0].mxu0 %v1786
      %v1971 = vpop.f32.mrb[0].mxu0
      %v1972 = vadd.f32 %v1848, %v1971
      %v1973 = vpop.f32.mrb[0].mxu0
      %1974 = vmatprep.mubr.f32.mxu0 0.0
      %1975 = vmatmul.mubr.f32.gmra.mrb[0].mxu0 %v1788
      %v1976 = vpop.f32.mrb[0].mxu0
      %v1977 = vadd.f32 %v1848, %v1976
      %v1978 = vpop.f32.mrb[0].mxu0
      %1979 = vmatprep.mubr.f32.mxu0 0.0
      %1980 = vmatmul.mubr.f32.gmra.mrb[0].mxu0 %v1790
      %v1981 = vpop.f32.mrb[0].mxu0
      %v1982 = vadd.f32 %v1848, %v1981
      %v1983 = vpop.f32.mrb[0].mxu0
      %1984 = vmatprep.mubr.f32.mxu0 0.0
      %1985 = vmatmul.mubr.f32.gmra.mrb[0].mxu0 %v1792
      %v1986 = vpop.f32.mrb[0].mxu0
      %v1987 = vadd.f32 %v1848, %v1986
      %v1988 = vpop.f32.mrb[0].mxu0
      %1989 = vmatprep.mubr.f32.mxu0 0.0
      %1990 = vmatmul.mubr.f32.gmra.mrb[0].mxu0 %v1794
      %v1991 = vpop.f32.mrb[0].mxu0
      %v1992 = vadd.f32 %v1848, %v1991
      %v1993 = vpop.f32.mrb[0].mxu0
      %1994 = vmatprep.mubr.f32.mxu0 0.0
      %1995 = vmatmul.mubr.f32.gmra.mrb[0].mxu0 %v1796
      %v1996 = vpop.f32.mrb[0].mxu0
      %v1997 = vadd.f32 %v1848, %v1996
      %v1998 = vpop.f32.mrb[0].mxu0
      %1999 = vmatprep.mubr.f32.mxu0 0.0
      %2000 = vmatmul.mubr.f32.gmra.mrb[0].mxu0 %v1798
      %v2001 = vpop.f32.mrb[0].mxu0
      %v2002 = vadd.f32 %v1848, %v2001
      %v2003 = vpop.f32.mrb[0].mxu0
      %2004 = vmatprep.mubr.f32.mxu0 0.0
      %2005 = vmatmul.mubr.f32.gmra.mrb[0].mxu0 %v1800
      %v2006 = vpop.f32.mrb[0].mxu0
      %v2007 = vadd.f32 %v1848, %v2006
      %v2008 = vpop.f32.mrb[0].mxu0
      %2009 = vmatprep.mubr.f32.mxu0 0.0
      %2010 = vmatmul.mubr.f32.gmra.mrb[0].mxu0 %v1802
      %v2011 = vpop.f32.mrb[0].mxu0
      %v2012 = vadd.f32 %v1848, %v2011
      %v2013 = vpop.f32.mrb[0].mxu0
      %2014 = vmatprep.mubr.f32.mxu0 0.0
      %2015 = vmatmul.mubr.f32.gmra.mrb[0].mxu0 %v1804
      %v2016 = vpop.f32.mrb[0].mxu0
      %v2017 = vadd.f32 %v1848, %v2016
      %v2018 = vpop.f32.mrb[0].mxu0
      %2019 = vmatprep.mubr.f32.mxu0 0.0
      %2020 = vmatmul.mubr.f32.gmra.mrb[0].mxu0 %v1806
      %v2021 = vpop.f32.mrb[0].mxu0
      %v2022 = vadd.f32 %v1848, %v2021
      %v2023 = vpop.f32.mrb[0].mxu0
      %2024 = vmatprep.mubr.f32.mxu0 0.0
      %2025 = vmatmul.mubr.f32.gmra.mrb[0].mxu0 %v1808
      %v2026 = vpop.f32.mrb[0].mxu0
      %v2027 = vadd.f32 %v1848, %v2026
      %v2028 = vpop.f32.mrb[0].mxu0
      %2029 = vmatprep.mubr.f32.mxu0 0.0
      %2030 = vmatmul.mubr.f32.gmra.mrb[0].mxu0 %v1810
      %v2031 = vpop.f32.mrb[0].mxu0
      %v2032 = vadd.f32 %v1848, %v2031
      %v2033 = vpop.f32.mrb[0].mxu0
      %2034 = vmatprep.mubr.f32.mxu0 0.0
      %2035 = vmatmul.mubr.f32.gmra.mrb[0].mxu0 %v1812
      %v2036 = vpop.f32.mrb[0].mxu0
      %v2037 = vadd.f32 %v1848, %v2036
      %v2038 = vpop.f32.mrb[0].mxu0
      %2039 = vmatprep.mubr.f32.mxu0 0.0
      %2040 = vmatmul.mubr.f32.gmra.mrb[0].mxu0 %v1814
      %v2041 = vpop.f32.mrb[0].mxu0
      %v2042 = vadd.f32 %v1848, %v2041
      %v2043 = vpop.f32.mrb[0].mxu0
      %2044 = vmatprep.mubr.f32.mxu0 0.0
      %2045 = vmatmul.mubr.f32.gmra.mrb[0].mxu0 %v1816
      %v2046 = vpop.f32.mrb[0].mxu0
      %v2047 = vadd.f32 %v1848, %v2046
      %v2048 = vpop.f32.mrb[0].mxu0
      %2049 = vmatprep.mubr.f32.mxu0 0.0
      %2050 = vmatmul.mubr.f32.gmra.mrb[0].mxu0 %v1818
      %v2051 = vpop.f32.mrb[0].mxu0
      %v2052 = vadd.f32 %v1848, %v2051
      %v2053 = vpop.f32.mrb[0].mxu0
      %2054 = vmatprep.mubr.f32.mxu0 0.0
      %2055 = vmatmul.mubr.f32.gmra.mrb[0].mxu0 %v1820
      %v2056 = vpop.f32.mrb[0].mxu0
      %v2057 = vadd.f32 %v1848, %v2056
      %v2058 = vpop.f32.mrb[0].mxu0
      %2059 = vmatprep.mubr.f32.mxu0 0.0
      %2060 = vmatmul.mubr.f32.gmra.mrb[0].mxu0 %v1822
      %v2061 = vpop.f32.mrb[0].mxu0
      %v2062 = vadd.f32 %v1848, %v2061
      %v2063 = vpop.f32.mrb[0].mxu0
      %2064 = vmatprep.mubr.f32.mxu0 0.0
      %2065 = vmatmul.mubr.f32.gmra.mrb[0].mxu0 %v1824
      %v2066 = vpop.f32.mrb[0].mxu0
      %v2067 = vadd.f32 %v1848, %v2066
      %v2068 = vpop.f32.mrb[0].mxu0
      %2069 = vmatprep.mubr.f32.mxu0 0.0
      %2070 = vmatmul.mubr.f32.gmra.mrb[0].mxu0 %v1826
      %v2071 = vpop.f32.mrb[0].mxu0
      %v2072 = vadd.f32 %v1848, %v2071
      %v2073 = vpop.f32.mrb[0].mxu0
      %2074 = vdwg.mxu0
      %v2075 = vxor.u32 %v1917, 2147483648
      %v2076 = vxor.u32 %v1922, 2147483648
      %v2077 = vxor.u32 %v1927, 2147483648
      %v2078 = vxor.u32 %v1932, 2147483648
      %v2079 = vxor.u32 %v1937, 2147483648
      %v2080 = vxor.u32 %v1942, 2147483648
      %v2081 = vxor.u32 %v1947, 2147483648
      %v2082 = vxor.u32 %v1952, 2147483648
      %v2083 = vxor.u32 %v1957, 2147483648
      %v2084 = vxor.u32 %v1962, 2147483648
      %v2085 = vxor.u32 %v1967, 2147483648
      %v2086 = vxor.u32 %v1972, 2147483648
      %v2087 = vxor.u32 %v1977, 2147483648
      %v2088 = vxor.u32 %v1982, 2147483648
      %v2089 = vxor.u32 %v1987, 2147483648
      %v2090 = vxor.u32 %v1992, 2147483648
      %v2091 = vxor.u32 %v1997, 2147483648
      %v2092 = vxor.u32 %v2002, 2147483648
      %v2093 = vxor.u32 %v2007, 2147483648
      %v2094 = vxor.u32 %v2012, 2147483648
      %v2095 = vxor.u32 %v2017, 2147483648
      %v2096 = vxor.u32 %v2022, 2147483648
      %v2097 = vxor.u32 %v2027, 2147483648
      %v2098 = vxor.u32 %v2032, 2147483648
      %v2099 = vxor.u32 %v2037, 2147483648
      %v2100 = vxor.u32 %v2042, 2147483648
      %v2101 = vxor.u32 %v2047, 2147483648
      %v2102 = vxor.u32 %v2052, 2147483648
      %v2103 = vxor.u32 %v2057, 2147483648
      %v2104 = vxor.u32 %v2062, 2147483648
      %v2105 = vxor.u32 %v2067, 2147483648
      %v2106 = vxor.u32 %v2072, 2147483648
      %v2107 = vmul.f32 %v2075, 1.442695
      %v2108 = vpow.pop %v2107
      %v2109 = vmul.f32 %v2076, 1.442695
      %v2110 = vpow.pop %v2109
      %v2111 = vmul.f32 %v2077, 1.442695
      %v2112 = vpow.pop %v2111
      %v2113 = vmul.f32 %v2078, 1.442695
      %v2114 = vpow.pop %v2113
      %v2115 = vmul.f32 %v2079, 1.442695
      %v2116 = vpow.pop %v2115
      %v2117 = vmul.f32 %v2080, 1.442695
      %v2118 = vpow.pop %v2117
      %v2119 = vmul.f32 %v2081, 1.442695
      %v2120 = vpow.pop %v2119
      %v2121 = vmul.f32 %v2082, 1.442695
      %v2122 = vpow.pop %v2121
      %v2123 = vmul.f32 %v2083, 1.442695
      %v2124 = vpow.pop %v2123
      %v2125 = vmul.f32 %v2084, 1.442695
      %v2126 = vpow.pop %v2125
      %v2127 = vmul.f32 %v2085, 1.442695
      %v2128 = vpow.pop %v2127
      %v2129 = vmul.f32 %v2086, 1.442695
      %v2130 = vpow.pop %v2129
      %v2131 = vmul.f32 %v2087, 1.442695
      %v2132 = vpow.pop %v2131
      %v2133 = vmul.f32 %v2088, 1.442695
      %v2134 = vpow.pop %v2133
      %v2135 = vmul.f32 %v2089, 1.442695
      %v2136 = vpow.pop %v2135
      %v2137 = vmul.f32 %v2090, 1.442695
      %v2138 = vpow.pop %v2137
      %v2139 = vmul.f32 %v2091, 1.442695
      %v2140 = vpow.pop %v2139
      %v2141 = vmul.f32 %v2092, 1.442695
      %v2142 = vpow.pop %v2141
      %v2143 = vmul.f32 %v2093, 1.442695
      %v2144 = vpow.pop %v2143
      %v2145 = vmul.f32 %v2094, 1.442695
      %v2146 = vpow.pop %v2145
      %v2147 = vmul.f32 %v2095, 1.442695
      %v2148 = vpow.pop %v2147
      %v2149 = vmul.f32 %v2096, 1.442695
      %v2150 = vpow.pop %v2149
      %v2151 = vmul.f32 %v2097, 1.442695
      %v2152 = vpow.pop %v2151
      %v2153 = vmul.f32 %v2098, 1.442695
      %v2154 = vpow.pop %v2153
      %v2155 = vmul.f32 %v2099, 1.442695
      %v2156 = vpow.pop %v2155
      %v2157 = vmul.f32 %v2100, 1.442695
      %v2158 = vpow.pop %v2157
      %v2159 = vmul.f32 %v2101, 1.442695
      %v2160 = vpow.pop %v2159
      %v2161 = vmul.f32 %v2102, 1.442695
      %v2162 = vpow.pop %v2161
      %v2163 = vmul.f32 %v2103, 1.442695
      %v2164 = vpow.pop %v2163
      %v2165 = vmul.f32 %v2104, 1.442695
      %v2166 = vpow.pop %v2165
      %v2167 = vmul.f32 %v2105, 1.442695
      %v2168 = vpow.pop %v2167
      %v2169 = vmul.f32 %v2106, 1.442695
      %v2170 = vpow.pop %v2169
      %v2171 = vadd.f32 %v2108, 1.0
      %v2172 = vadd.f32 %v2110, 1.0
      %v2173 = vadd.f32 %v2112, 1.0
      %v2174 = vadd.f32 %v2114, 1.0
      %v2175 = vadd.f32 %v2116, 1.0
      %v2176 = vadd.f32 %v2118, 1.0
      %v2177 = vadd.f32 %v2120, 1.0
      %v2178 = vadd.f32 %v2122, 1.0
      %v2179 = vadd.f32 %v2124, 1.0
      %v2180 = vadd.f32 %v2126, 1.0
      %v2181 = vadd.f32 %v2128, 1.0
      %v2182 = vadd.f32 %v2130, 1.0
      %v2183 = vadd.f32 %v2132, 1.0
      %v2184 = vadd.f32 %v2134, 1.0
      %v2185 = vadd.f32 %v2136, 1.0
      %v2186 = vadd.f32 %v2138, 1.0
      %v2187 = vadd.f32 %v2140, 1.0
      %v2188 = vadd.f32 %v2142, 1.0
      %v2189 = vadd.f32 %v2144, 1.0
      %v2190 = vadd.f32 %v2146, 1.0
      %v2191 = vadd.f32 %v2148, 1.0
      %v2192 = vadd.f32 %v2150, 1.0
      %v2193 = vadd.f32 %v2152, 1.0
      %v2194 = vadd.f32 %v2154, 1.0
      %v2195 = vadd.f32 %v2156, 1.0
      %v2196 = vadd.f32 %v2158, 1.0
      %v2197 = vadd.f32 %v2160, 1.0
      %v2198 = vadd.f32 %v2162, 1.0
      %v2199 = vadd.f32 %v2164, 1.0
      %v2200 = vadd.f32 %v2166, 1.0
      %v2201 = vadd.f32 %v2168, 1.0
      %v2202 = vadd.f32 %v2170, 1.0
      %v2203 = vrcp.pop %v2171
      %v2204 = vmul.f32 1.0, %v2203
      %v2205 = vrcp.pop %v2172
      %v2206 = vmul.f32 1.0, %v2205
      %v2207 = vrcp.pop %v2173
      %v2208 = vmul.f32 1.0, %v2207
      %v2209 = vrcp.pop %v2174
      %v2210 = vmul.f32 1.0, %v2209
      %v2211 = vrcp.pop %v2175
      %v2212 = vmul.f32 1.0, %v2211
      %v2213 = vrcp.pop %v2176
      %v2214 = vmul.f32 1.0, %v2213
      %v2215 = vrcp.pop %v2177
      %v2216 = vmul.f32 1.0, %v2215
      %v2217 = vrcp.pop %v2178
      %v2218 = vmul.f32 1.0, %v2217
      %v2219 = vrcp.pop %v2179
      %v2220 = vmul.f32 1.0, %v2219
      %v2221 = vrcp.pop %v2180
      %v2222 = vmul.f32 1.0, %v2221
      %v2223 = vrcp.pop %v2181
      %v2224 = vmul.f32 1.0, %v2223
      %v2225 = vrcp.pop %v2182
      %v2226 = vmul.f32 1.0, %v2225
      %v2227 = vrcp.pop %v2183
      %v2228 = vmul.f32 1.0, %v2227
      %v2229 = vrcp.pop %v2184
      %v2230 = vmul.f32 1.0, %v2229
      %v2231 = vrcp.pop %v2185
      %v2232 = vmul.f32 1.0, %v2231
      %v2233 = vrcp.pop %v2186
      %v2234 = vmul.f32 1.0, %v2233
      %v2235 = vrcp.pop %v2187
      %v2236 = vmul.f32 1.0, %v2235
      %v2237 = vrcp.pop %v2188
      %v2238 = vmul.f32 1.0, %v2237
      %v2239 = vrcp.pop %v2189
      %v2240 = vmul.f32 1.0, %v2239
      %v2241 = vrcp.pop %v2190
      %v2242 = vmul.f32 1.0, %v2241
      %v2243 = vrcp.pop %v2191
      %v2244 = vmul.f32 1.0, %v2243
      %v2245 = vrcp.pop %v2192
      %v2246 = vmul.f32 1.0, %v2245
      %v2247 = vrcp.pop %v2193
      %v2248 = vmul.f32 1.0, %v2247
      %v2249 = vrcp.pop %v2194
      %v2250 = vmul.f32 1.0, %v2249
      %v2251 = vrcp.pop %v2195
      %v2252 = vmul.f32 1.0, %v2251
      %v2253 = vrcp.pop %v2196
      %v2254 = vmul.f32 1.0, %v2253
      %v2255 = vrcp.pop %v2197
      %v2256 = vmul.f32 1.0, %v2255
      %v2257 = vrcp.pop %v2198
      %v2258 = vmul.f32 1.0, %v2257
      %v2259 = vrcp.pop %v2199
      %v2260 = vmul.f32 1.0, %v2259
      %v2261 = vrcp.pop %v2200
      %v2262 = vmul.f32 1.0, %v2261
      %v2263 = vrcp.pop %v2201
      %v2264 = vmul.f32 1.0, %v2263
      %v2265 = vrcp.pop %v2202
      %v2266 = vmul.f32 1.0, %v2265
      %v2267 = vld [vmem:[%s10] sm:$0xff]
      %v2268 = vld [vmem:[%s10 + $0x8] sm:$0xff]
      %v2269 = vld [vmem:[%s10 + $0x10] sm:$0xff]
      %v2270 = vld [vmem:[%s10 + $0x18] sm:$0xff]
      %v2271 = vld [vmem:[%s10 + $0x20] sm:$0xff]
      %v2272 = vld [vmem:[%s10 + $0x28] sm:$0xff]
      %v2273 = vld [vmem:[%s10 + $0x30] sm:$0xff]
      %v2274 = vld [vmem:[%s10 + $0x38] sm:$0xff]
      %v2275 = vld [vmem:[%s10 + $0x40] sm:$0xff]
      %v2276 = vld [vmem:[%s10 + $0x48] sm:$0xff]
      %v2277 = vld [vmem:[%s10 + $0x50] sm:$0xff]
      %v2278 = vld [vmem:[%s10 + $0x58] sm:$0xff]
      %v2279 = vld [vmem:[%s10 + $0x60] sm:$0xff]
      %v2280 = vld [vmem:[%s10 + $0x68] sm:$0xff]
      %v2281 = vld [vmem:[%s10 + $0x70] sm:$0xff]
      %v2282 = vld [vmem:[%s10 + $0x78] sm:$0xff]
      %v2283 = vld [vmem:[%s11] sm:$0x1]
      %v2285 = vlaneseq
      %v2286 = vshrl.u32 %v2285, 7
      %v2287 = vsub.s32 0, %v2286
      %v2288 = vrot.slane %v2283, %v2287
      %2290 = vmatprep.subr.mxu0 0.0
      %2291 = vmatpush1.msra.mxu0 %v2267
      %2292 = vmatprep.subr.mxu0 0.0
      %2293 = vmatpush1.msra.mxu0 %v2268
      %2294 = vmatprep.subr.mxu0 0.0
      %2295 = vmatpush1.msra.mxu0 %v2269
      %2296 = vmatprep.subr.mxu0 0.0
      %2297 = vmatpush1.msra.mxu0 %v2270
      %2298 = vmatprep.subr.mxu0 0.0
      %2299 = vmatpush1.msra.mxu0 %v2271
      %2300 = vmatprep.subr.mxu0 0.0
      %2301 = vmatpush1.msra.mxu0 %v2272
      %2302 = vmatprep.subr.mxu0 0.0
      %2303 = vmatpush1.msra.mxu0 %v2273
      %2304 = vmatprep.subr.mxu0 0.0
      %2305 = vmatpush1.msra.mxu0 %v2274
      %2306 = vmatprep.subr.mxu0 0.0
      %2307 = vmatpush1.msra.mxu0 %v2275
      %2308 = vmatprep.subr.mxu0 0.0
      %2309 = vmatpush1.msra.mxu0 %v2276
      %2310 = vmatprep.subr.mxu0 0.0
      %2311 = vmatpush1.msra.mxu0 %v2277
      %2312 = vmatprep.subr.mxu0 0.0
      %2313 = vmatpush1.msra.mxu0 %v2278
      %2314 = vmatprep.subr.mxu0 0.0
      %2315 = vmatpush1.msra.mxu0 %v2279
      %2316 = vmatprep.subr.mxu0 0.0
      %2317 = vmatpush1.msra.mxu0 %v2280
      %2318 = vmatprep.subr.mxu0 0.0
      %2319 = vmatpush1.msra.mxu0 %v2281
      %2320 = vmatprep.subr.mxu0 0.0
      %2321 = vmatpush1.msra.mxu0 %v2282
      %2322 = vmatprep.subr.mxu0 0.0
      %2323 = vmatpush1.msra.mxu0 0.0
      %2324 = vmatprep.subr.mxu0 0.0
      %2325 = vmatpush1.msra.mxu0 0.0
      %2326 = vmatprep.subr.mxu0 0.0
      %2327 = vmatpush1.msra.mxu0 0.0
      %2328 = vmatprep.subr.mxu0 0.0
      %2329 = vmatpush1.msra.mxu0 0.0
      %2330 = vmatprep.subr.mxu0 0.0
      %2331 = vmatpush1.msra.mxu0 0.0
      %2332 = vmatprep.subr.mxu0 0.0
      %2333 = vmatpush1.msra.mxu0 0.0
      %2334 = vmatprep.subr.mxu0 0.0
      %2335 = vmatpush1.msra.mxu0 0.0
      %2336 = vmatprep.subr.mxu0 0.0
      %2337 = vmatpush1.msra.mxu0 0.0
      %2338 = vmatprep.subr.mxu0 0.0
      %2339 = vmatpush1.msra.mxu0 0.0
      %2340 = vmatprep.subr.mxu0 0.0
      %2341 = vmatpush1.msra.mxu0 0.0
      %2342 = vmatprep.subr.mxu0 0.0
      %2343 = vmatpush1.msra.mxu0 0.0
      %2344 = vmatprep.subr.mxu0 0.0
      %2345 = vmatpush1.msra.mxu0 0.0
      %2346 = vmatprep.subr.mxu0 0.0
      %2347 = vmatpush1.msra.mxu0 0.0
      %2348 = vmatprep.subr.mxu0 0.0
      %2349 = vmatpush1.msra.mxu0 0.0
      %2350 = vmatprep.subr.mxu0 0.0
      %2351 = vmatpush1.msra.mxu0 0.0
      %2352 = vmatprep.subr.mxu0 0.0
      %2353 = vmatpush1.msra.mxu0 0.0
      %2354 = vmatprep.mubr.f32.mxu0 0.0
      %2355 = vmatmul.mubr.f32.gmra.mrb[0].mxu0 %v2204
      %v2356 = vpop.f32.mrb[0].mxu0
      %v2357 = vadd.f32 %v2288, %v2356
      %v2358 = vpop.f32.mrb[0].mxu0
      %2359 = vmatprep.mubr.f32.mxu0 0.0
      %2360 = vmatmul.mubr.f32.gmra.mrb[0].mxu0 %v2206
      %v2361 = vpop.f32.mrb[0].mxu0
      %v2362 = vadd.f32 %v2288, %v2361
      %v2363 = vpop.f32.mrb[0].mxu0
      %2364 = vmatprep.mubr.f32.mxu0 0.0
      %2365 = vmatmul.mubr.f32.gmra.mrb[0].mxu0 %v2208
      %v2366 = vpop.f32.mrb[0].mxu0
      %v2367 = vadd.f32 %v2288, %v2366
      %v2368 = vpop.f32.mrb[0].mxu0
      %2369 = vmatprep.mubr.f32.mxu0 0.0
      %2370 = vmatmul.mubr.f32.gmra.mrb[0].mxu0 %v2210
      %v2371 = vpop.f32.mrb[0].mxu0
      %v2372 = vadd.f32 %v2288, %v2371
      %v2373 = vpop.f32.mrb[0].mxu0
      %2374 = vmatprep.mubr.f32.mxu0 0.0
      %2375 = vmatmul.mubr.f32.gmra.mrb[0].mxu0 %v2212
      %v2376 = vpop.f32.mrb[0].mxu0
      %v2377 = vadd.f32 %v2288, %v2376
      %v2378 = vpop.f32.mrb[0].mxu0
      %2379 = vmatprep.mubr.f32.mxu0 0.0
      %2380 = vmatmul.mubr.f32.gmra.mrb[0].mxu0 %v2214
      %v2381 = vpop.f32.mrb[0].mxu0
      %v2382 = vadd.f32 %v2288, %v2381
      %v2383 = vpop.f32.mrb[0].mxu0
      %2384 = vmatprep.mubr.f32.mxu0 0.0
      %2385 = vmatmul.mubr.f32.gmra.mrb[0].mxu0 %v2216
      %v2386 = vpop.f32.mrb[0].mxu0
      %v2387 = vadd.f32 %v2288, %v2386
      %v2388 = vpop.f32.mrb[0].mxu0
      %2389 = vmatprep.mubr.f32.mxu0 0.0
      %2390 = vmatmul.mubr.f32.gmra.mrb[0].mxu0 %v2218
      %v2391 = vpop.f32.mrb[0].mxu0
      %v2392 = vadd.f32 %v2288, %v2391
      %v2393 = vpop.f32.mrb[0].mxu0
      %2394 = vmatprep.mubr.f32.mxu0 0.0
      %2395 = vmatmul.mubr.f32.gmra.mrb[0].mxu0 %v2220
      %v2396 = vpop.f32.mrb[0].mxu0
      %v2397 = vadd.f32 %v2288, %v2396
      %v2398 = vpop.f32.mrb[0].mxu0
      %2399 = vmatprep.mubr.f32.mxu0 0.0
      %2400 = vmatmul.mubr.f32.gmra.mrb[0].mxu0 %v2222
      %v2401 = vpop.f32.mrb[0].mxu0
      %v2402 = vadd.f32 %v2288, %v2401
      %v2403 = vpop.f32.mrb[0].mxu0
      %2404 = vmatprep.mubr.f32.mxu0 0.0
      %2405 = vmatmul.mubr.f32.gmra.mrb[0].mxu0 %v2224
      %v2406 = vpop.f32.mrb[0].mxu0
      %v2407 = vadd.f32 %v2288, %v2406
      %v2408 = vpop.f32.mrb[0].mxu0
      %2409 = vmatprep.mubr.f32.mxu0 0.0
      %2410 = vmatmul.mubr.f32.gmra.mrb[0].mxu0 %v2226
      %v2411 = vpop.f32.mrb[0].mxu0
      %v2412 = vadd.f32 %v2288, %v2411
      %v2413 = vpop.f32.mrb[0].mxu0
      %2414 = vmatprep.mubr.f32.mxu0 0.0
      %2415 = vmatmul.mubr.f32.gmra.mrb[0].mxu0 %v2228
      %v2416 = vpop.f32.mrb[0].mxu0
      %v2417 = vadd.f32 %v2288, %v2416
      %v2418 = vpop.f32.mrb[0].mxu0
      %2419 = vmatprep.mubr.f32.mxu0 0.0
      %2420 = vmatmul.mubr.f32.gmra.mrb[0].mxu0 %v2230
      %v2421 = vpop.f32.mrb[0].mxu0
      %v2422 = vadd.f32 %v2288, %v2421
      %v2423 = vpop.f32.mrb[0].mxu0
      %2424 = vmatprep.mubr.f32.mxu0 0.0
      %2425 = vmatmul.mubr.f32.gmra.mrb[0].mxu0 %v2232
      %v2426 = vpop.f32.mrb[0].mxu0
      %v2427 = vadd.f32 %v2288, %v2426
      %v2428 = vpop.f32.mrb[0].mxu0
      %2429 = vmatprep.mubr.f32.mxu0 0.0
      %2430 = vmatmul.mubr.f32.gmra.mrb[0].mxu0 %v2234
      %v2431 = vpop.f32.mrb[0].mxu0
      %v2432 = vadd.f32 %v2288, %v2431
      %v2433 = vpop.f32.mrb[0].mxu0
      %2434 = vmatprep.mubr.f32.mxu0 0.0
      %2435 = vmatmul.mubr.f32.gmra.mrb[0].mxu0 %v2236
      %v2436 = vpop.f32.mrb[0].mxu0
      %v2437 = vadd.f32 %v2288, %v2436
      %v2438 = vpop.f32.mrb[0].mxu0
      %2439 = vmatprep.mubr.f32.mxu0 0.0
      %2440 = vmatmul.mubr.f32.gmra.mrb[0].mxu0 %v2238
      %v2441 = vpop.f32.mrb[0].mxu0
      %v2442 = vadd.f32 %v2288, %v2441
      %v2443 = vpop.f32.mrb[0].mxu0
      %2444 = vmatprep.mubr.f32.mxu0 0.0
      %2445 = vmatmul.mubr.f32.gmra.mrb[0].mxu0 %v2240
      %v2446 = vpop.f32.mrb[0].mxu0
      %v2447 = vadd.f32 %v2288, %v2446
      %v2448 = vpop.f32.mrb[0].mxu0
      %2449 = vmatprep.mubr.f32.mxu0 0.0
      %2450 = vmatmul.mubr.f32.gmra.mrb[0].mxu0 %v2242
      %v2451 = vpop.f32.mrb[0].mxu0
      %v2452 = vadd.f32 %v2288, %v2451
      %v2453 = vpop.f32.mrb[0].mxu0
      %2454 = vmatprep.mubr.f32.mxu0 0.0
      %2455 = vmatmul.mubr.f32.gmra.mrb[0].mxu0 %v2244
      %v2456 = vpop.f32.mrb[0].mxu0
      %v2457 = vadd.f32 %v2288, %v2456
      %v2458 = vpop.f32.mrb[0].mxu0
      %2459 = vmatprep.mubr.f32.mxu0 0.0
      %2460 = vmatmul.mubr.f32.gmra.mrb[0].mxu0 %v2246
      %v2461 = vpop.f32.mrb[0].mxu0
      %v2462 = vadd.f32 %v2288, %v2461
      %v2463 = vpop.f32.mrb[0].mxu0
      %2464 = vmatprep.mubr.f32.mxu0 0.0
      %2465 = vmatmul.mubr.f32.gmra.mrb[0].mxu0 %v2248
      %v2466 = vpop.f32.mrb[0].mxu0
      %v2467 = vadd.f32 %v2288, %v2466
      %v2468 = vpop.f32.mrb[0].mxu0
      %2469 = vmatprep.mubr.f32.mxu0 0.0
      %2470 = vmatmul.mubr.f32.gmra.mrb[0].mxu0 %v2250
      %v2471 = vpop.f32.mrb[0].mxu0
      %v2472 = vadd.f32 %v2288, %v2471
      %v2473 = vpop.f32.mrb[0].mxu0
      %2474 = vmatprep.mubr.f32.mxu0 0.0
      %2475 = vmatmul.mubr.f32.gmra.mrb[0].mxu0 %v2252
      %v2476 = vpop.f32.mrb[0].mxu0
      %v2477 = vadd.f32 %v2288, %v2476
      %v2478 = vpop.f32.mrb[0].mxu0
      %2479 = vmatprep.mubr.f32.mxu0 0.0
      %2480 = vmatmul.mubr.f32.gmra.mrb[0].mxu0 %v2254
      %v2481 = vpop.f32.mrb[0].mxu0
      %v2482 = vadd.f32 %v2288, %v2481
      %v2483 = vpop.f32.mrb[0].mxu0
      %2484 = vmatprep.mubr.f32.mxu0 0.0
      %2485 = vmatmul.mubr.f32.gmra.mrb[0].mxu0 %v2256
      %v2486 = vpop.f32.mrb[0].mxu0
      %v2487 = vadd.f32 %v2288, %v2486
      %v2488 = vpop.f32.mrb[0].mxu0
      %2489 = vmatprep.mubr.f32.mxu0 0.0
      %2490 = vmatmul.mubr.f32.gmra.mrb[0].mxu0 %v2258
      %v2491 = vpop.f32.mrb[0].mxu0
      %v2492 = vadd.f32 %v2288, %v2491
      %v2493 = vpop.f32.mrb[0].mxu0
      %2494 = vmatprep.mubr.f32.mxu0 0.0
      %2495 = vmatmul.mubr.f32.gmra.mrb[0].mxu0 %v2260
      %v2496 = vpop.f32.mrb[0].mxu0
      %v2497 = vadd.f32 %v2288, %v2496
      %v2498 = vpop.f32.mrb[0].mxu0
      %2499 = vmatprep.mubr.f32.mxu0 0.0
      %2500 = vmatmul.mubr.f32.gmra.mrb[0].mxu0 %v2262
      %v2501 = vpop.f32.mrb[0].mxu0
      %v2502 = vadd.f32 %v2288, %v2501
      %v2503 = vpop.f32.mrb[0].mxu0
      %2504 = vmatprep.mubr.f32.mxu0 0.0
      %2505 = vmatmul.mubr.f32.gmra.mrb[0].mxu0 %v2264
      %v2506 = vpop.f32.mrb[0].mxu0
      %v2507 = vadd.f32 %v2288, %v2506
      %v2508 = vpop.f32.mrb[0].mxu0
      %2509 = vmatprep.mubr.f32.mxu0 0.0
      %2510 = vmatmul.mubr.f32.gmra.mrb[0].mxu0 %v2266
      %v2511 = vpop.f32.mrb[0].mxu0
      %v2512 = vadd.f32 %v2288, %v2511
      %v2513 = vpop.f32.mrb[0].mxu0
      %2514 = vdwg.mxu0
      %2515 = vst [vmem:[%s470] sm:$0xff] %v2357
      %2516 = vst [vmem:[%s470 + $0x8] sm:$0xff] %v2362
      %2517 = vst [vmem:[%s470 + $0x10] sm:$0xff] %v2367
      %2518 = vst [vmem:[%s470 + $0x18] sm:$0xff] %v2372
      %2519 = vst [vmem:[%s470 + $0x20] sm:$0xff] %v2377
      %2520 = vst [vmem:[%s470 + $0x28] sm:$0xff] %v2382
      %2521 = vst [vmem:[%s470 + $0x30] sm:$0xff] %v2387
      %2522 = vst [vmem:[%s470 + $0x38] sm:$0xff] %v2392
      %2523 = vst [vmem:[%s470 + $0x40] sm:$0xff] %v2397
      %2524 = vst [vmem:[%s470 + $0x48] sm:$0xff] %v2402
      %2525 = vst [vmem:[%s470 + $0x50] sm:$0xff] %v2407
      %2526 = vst [vmem:[%s470 + $0x58] sm:$0xff] %v2412
      %2527 = vst [vmem:[%s470 + $0x60] sm:$0xff] %v2417
      %2528 = vst [vmem:[%s470 + $0x68] sm:$0xff] %v2422
      %2529 = vst [vmem:[%s470 + $0x70] sm:$0xff] %v2427
      %2530 = vst [vmem:[%s470 + $0x78] sm:$0xff] %v2432
      %2531 = vst [vmem:[%s470 + $0x80] sm:$0xff] %v2437
      %2532 = vst [vmem:[%s470 + $0x88] sm:$0xff] %v2442
      %2533 = vst [vmem:[%s470 + $0x90] sm:$0xff] %v2447
      %2534 = vst [vmem:[%s470 + $0x98] sm:$0xff] %v2452
      %2535 = vst [vmem:[%s470 + $0xa0] sm:$0xff] %v2457
      %2536 = vst [vmem:[%s470 + $0xa8] sm:$0xff] %v2462
      %2537 = vst [vmem:[%s470 + $0xb0] sm:$0xff] %v2467
      %2538 = vst [vmem:[%s470 + $0xb8] sm:$0xff] %v2472
      %2539 = vst [vmem:[%s470 + $0xc0] sm:$0xff] %v2477
      %2540 = vst [vmem:[%s470 + $0xc8] sm:$0xff] %v2482
      %2541 = vst [vmem:[%s470 + $0xd0] sm:$0xff] %v2487
      %2542 = vst [vmem:[%s470 + $0xd8] sm:$0xff] %v2492
      %2543 = vst [vmem:[%s470 + $0xe0] sm:$0xff] %v2497
      %2544 = vst [vmem:[%s470 + $0xe8] sm:$0xff] %v2502
      %2545 = vst [vmem:[%s470 + $0xf0] sm:$0xff] %v2507
      %2546 = vst [vmem:[%s470 + $0xf8] sm:$0xff] %v2512
      %v2547 = vld [vmem:[%s464] sm:$0xff]
      %v2548 = vld [vmem:[%s464 + $0x8] sm:$0xff]
      %v2549 = vld [vmem:[%s464 + $0x10] sm:$0xff]
      %v2550 = vld [vmem:[%s464 + $0x18] sm:$0xff]
      %v2551 = vld [vmem:[%s464 + $0x20] sm:$0xff]
      %v2552 = vld [vmem:[%s464 + $0x28] sm:$0xff]
      %v2553 = vld [vmem:[%s464 + $0x30] sm:$0xff]
      %v2554 = vld [vmem:[%s464 + $0x38] sm:$0xff]
      %v2555 = vld [vmem:[%s464 + $0x40] sm:$0xff]
      %v2556 = vld [vmem:[%s464 + $0x48] sm:$0xff]
      %v2557 = vld [vmem:[%s464 + $0x50] sm:$0xff]
      %v2558 = vld [vmem:[%s464 + $0x58] sm:$0xff]
      %v2559 = vld [vmem:[%s464 + $0x60] sm:$0xff]
      %v2560 = vld [vmem:[%s464 + $0x68] sm:$0xff]
      %v2561 = vld [vmem:[%s464 + $0x70] sm:$0xff]
      %v2562 = vld [vmem:[%s464 + $0x78] sm:$0xff]
      %v2563 = vld [vmem:[%s464 + $0x80] sm:$0xff]
      %v2564 = vld [vmem:[%s464 + $0x88] sm:$0xff]
      %v2565 = vld [vmem:[%s464 + $0x90] sm:$0xff]
      %v2566 = vld [vmem:[%s464 + $0x98] sm:$0xff]
      %v2567 = vld [vmem:[%s464 + $0xa0] sm:$0xff]
      %v2568 = vld [vmem:[%s464 + $0xa8] sm:$0xff]
      %v2569 = vld [vmem:[%s464 + $0xb0] sm:$0xff]
      %v2570 = vld [vmem:[%s464 + $0xb8] sm:$0xff]
      %v2571 = vld [vmem:[%s464 + $0xc0] sm:$0xff]
      %v2572 = vld [vmem:[%s464 + $0xc8] sm:$0xff]
      %v2573 = vld [vmem:[%s464 + $0xd0] sm:$0xff]
      %v2574 = vld [vmem:[%s464 + $0xd8] sm:$0xff]
      %v2575 = vld [vmem:[%s464 + $0xe0] sm:$0xff]
      %v2576 = vld [vmem:[%s464 + $0xe8] sm:$0xff]
      %v2577 = vld [vmem:[%s464 + $0xf0] sm:$0xff]
      %v2578 = vld [vmem:[%s464 + $0xf8] sm:$0xff]
      %v2579 = vsub.f32 %v2357, %v2547
      %v2580 = vsub.f32 %v2362, %v2548
      %v2581 = vsub.f32 %v2367, %v2549
      %v2582 = vsub.f32 %v2372, %v2550
      %v2583 = vsub.f32 %v2377, %v2551
      %v2584 = vsub.f32 %v2382, %v2552
      %v2585 = vsub.f32 %v2387, %v2553
      %v2586 = vsub.f32 %v2392, %v2554
      %v2587 = vsub.f32 %v2397, %v2555
      %v2588 = vsub.f32 %v2402, %v2556
      %v2589 = vsub.f32 %v2407, %v2557
      %v2590 = vsub.f32 %v2412, %v2558
      %v2591 = vsub.f32 %v2417, %v2559
      %v2592 = vsub.f32 %v2422, %v2560
      %v2593 = vsub.f32 %v2427, %v2561
      %v2594 = vsub.f32 %v2432, %v2562
      %v2595 = vsub.f32 %v2437, %v2563
      %v2596 = vsub.f32 %v2442, %v2564
      %v2597 = vsub.f32 %v2447, %v2565
      %v2598 = vsub.f32 %v2452, %v2566
      %v2599 = vsub.f32 %v2457, %v2567
      %v2600 = vsub.f32 %v2462, %v2568
      %v2601 = vsub.f32 %v2467, %v2569
      %v2602 = vsub.f32 %v2472, %v2570
      %v2603 = vsub.f32 %v2477, %v2571
      %v2604 = vsub.f32 %v2482, %v2572
      %v2605 = vsub.f32 %v2487, %v2573
      %v2606 = vsub.f32 %v2492, %v2574
      %v2607 = vsub.f32 %v2497, %v2575
      %v2608 = vsub.f32 %v2502, %v2576
      %v2609 = vsub.f32 %v2507, %v2577
      %v2610 = vsub.f32 %v2512, %v2578
      %s2611 = smul.u32 %s25, 256
      %v2612 = vlaneseq
      %v2613 = vshrl.u32 %v2612, 7
      %v2614 = vadd.s32 %v2613, 8
      %v2615 = vadd.s32 %v2613, 16
      %v2616 = vadd.s32 %v2613, 24
      %v2617 = vadd.s32 %v2613, 32
      %v2618 = vadd.s32 %v2613, 40
      %v2619 = vadd.s32 %v2613, 48
      %v2620 = vadd.s32 %v2613, 56
      %v2621 = vadd.s32 %v2613, 64
      %v2622 = vadd.s32 %v2613, 72
      %v2623 = vadd.s32 %v2613, 80
      %v2624 = vadd.s32 %v2613, 88
      %v2625 = vadd.s32 %v2613, 96
      %v2626 = vadd.s32 %v2613, 104
      %v2627 = vadd.s32 %v2613, 112
      %v2628 = vadd.s32 %v2613, 120
      %v2629 = vadd.s32 %v2613, 128
      %v2630 = vadd.s32 %v2613, 136
      %v2631 = vadd.s32 %v2613, 144
      %v2632 = vadd.s32 %v2613, 152
      %v2633 = vadd.s32 %v2613, 160
      %v2634 = vadd.s32 %v2613, 168
      %v2635 = vadd.s32 %v2613, 176
      %v2636 = vadd.s32 %v2613, 184
      %v2637 = vadd.s32 %v2613, 192
      %v2638 = vadd.s32 %v2613, 200
      %v2639 = vadd.s32 %v2613, 208
      %v2640 = vadd.s32 %v2613, 216
      %v2641 = vadd.s32 %v2613, 224
      %v2642 = vadd.s32 %v2613, 232
      %v2643 = vadd.s32 %v2613, 240
      %v2644 = vadd.s32 %v2613, 248
      %v2645 = vstv %s2611
      %v2646 = vadd.s32 %v2645, %v2613
      %v2647 = vadd.s32 %v2645, %v2614
      %v2648 = vadd.s32 %v2645, %v2615
      %v2649 = vadd.s32 %v2645, %v2616
      %v2650 = vadd.s32 %v2645, %v2617
      %v2651 = vadd.s32 %v2645, %v2618
      %v2652 = vadd.s32 %v2645, %v2619
      %v2653 = vadd.s32 %v2645, %v2620
      %v2654 = vadd.s32 %v2645, %v2621
      %v2655 = vadd.s32 %v2645, %v2622
      %v2656 = vadd.s32 %v2645, %v2623
      %v2657 = vadd.s32 %v2645, %v2624
      %v2658 = vadd.s32 %v2645, %v2625
      %v2659 = vadd.s32 %v2645, %v2626
      %v2660 = vadd.s32 %v2645, %v2627
      %v2661 = vadd.s32 %v2645, %v2628
      %v2662 = vadd.s32 %v2645, %v2629
      %v2663 = vadd.s32 %v2645, %v2630
      %v2664 = vadd.s32 %v2645, %v2631
      %v2665 = vadd.s32 %v2645, %v2632
      %v2666 = vadd.s32 %v2645, %v2633
      %v2667 = vadd.s32 %v2645, %v2634
      %v2668 = vadd.s32 %v2645, %v2635
      %v2669 = vadd.s32 %v2645, %v2636
      %v2670 = vadd.s32 %v2645, %v2637
      %v2671 = vadd.s32 %v2645, %v2638
      %v2672 = vadd.s32 %v2645, %v2639
      %v2673 = vadd.s32 %v2645, %v2640
      %v2674 = vadd.s32 %v2645, %v2641
      %v2675 = vadd.s32 %v2645, %v2642
      %v2676 = vadd.s32 %v2645, %v2643
      %v2677 = vadd.s32 %v2645, %v2644
      %vm2678 = vcmp.lt.s32.totalorder %v2646, 300
      %vm2679 = vcmp.lt.s32.totalorder %v2647, 300
      %vm2680 = vcmp.lt.s32.totalorder %v2648, 300
      %vm2681 = vcmp.lt.s32.totalorder %v2649, 300
      %vm2682 = vcmp.lt.s32.totalorder %v2650, 300
      %vm2683 = vcmp.lt.s32.totalorder %v2651, 300
      %vm2684 = vcmp.lt.s32.totalorder %v2652, 300
      %vm2685 = vcmp.lt.s32.totalorder %v2653, 300
      %vm2686 = vcmp.lt.s32.totalorder %v2654, 300
      %vm2687 = vcmp.lt.s32.totalorder %v2655, 300
      %vm2688 = vcmp.lt.s32.totalorder %v2656, 300
      %vm2689 = vcmp.lt.s32.totalorder %v2657, 300
      %vm2690 = vcmp.lt.s32.totalorder %v2658, 300
      %vm2691 = vcmp.lt.s32.totalorder %v2659, 300
      %vm2692 = vcmp.lt.s32.totalorder %v2660, 300
      %vm2693 = vcmp.lt.s32.totalorder %v2661, 300
      %vm2694 = vcmp.lt.s32.totalorder %v2662, 300
      %vm2695 = vcmp.lt.s32.totalorder %v2663, 300
      %vm2696 = vcmp.lt.s32.totalorder %v2664, 300
      %vm2697 = vcmp.lt.s32.totalorder %v2665, 300
      %vm2698 = vcmp.lt.s32.totalorder %v2666, 300
      %vm2699 = vcmp.lt.s32.totalorder %v2667, 300
      %vm2700 = vcmp.lt.s32.totalorder %v2668, 300
      %vm2701 = vcmp.lt.s32.totalorder %v2669, 300
      %vm2702 = vcmp.lt.s32.totalorder %v2670, 300
      %vm2703 = vcmp.lt.s32.totalorder %v2671, 300
      %vm2704 = vcmp.lt.s32.totalorder %v2672, 300
      %vm2705 = vcmp.lt.s32.totalorder %v2673, 300
      %vm2706 = vcmp.lt.s32.totalorder %v2674, 300
      %vm2707 = vcmp.lt.s32.totalorder %v2675, 300
      %vm2708 = vcmp.lt.s32.totalorder %v2676, 300
      %vm2709 = vcmp.lt.s32.totalorder %v2677, 300
      %v2710 = vmul.f32 %v2579, %v2579
      %v2711 = vmul.f32 %v2580, %v2580
      %v2712 = vmul.f32 %v2581, %v2581
      %v2713 = vmul.f32 %v2582, %v2582
      %v2714 = vmul.f32 %v2583, %v2583
      %v2715 = vmul.f32 %v2584, %v2584
      %v2716 = vmul.f32 %v2585, %v2585
      %v2717 = vmul.f32 %v2586, %v2586
      %v2718 = vmul.f32 %v2587, %v2587
      %v2719 = vmul.f32 %v2588, %v2588
      %v2720 = vmul.f32 %v2589, %v2589
      %v2721 = vmul.f32 %v2590, %v2590
      %v2722 = vmul.f32 %v2591, %v2591
      %v2723 = vmul.f32 %v2592, %v2592
      %v2724 = vmul.f32 %v2593, %v2593
      %v2725 = vmul.f32 %v2594, %v2594
      %v2726 = vmul.f32 %v2595, %v2595
      %v2727 = vmul.f32 %v2596, %v2596
      %v2728 = vmul.f32 %v2597, %v2597
      %v2729 = vmul.f32 %v2598, %v2598
      %v2730 = vmul.f32 %v2599, %v2599
      %v2731 = vmul.f32 %v2600, %v2600
      %v2732 = vmul.f32 %v2601, %v2601
      %v2733 = vmul.f32 %v2602, %v2602
      %v2734 = vmul.f32 %v2603, %v2603
      %v2735 = vmul.f32 %v2604, %v2604
      %v2736 = vmul.f32 %v2605, %v2605
      %v2737 = vmul.f32 %v2606, %v2606
      %v2738 = vmul.f32 %v2607, %v2607
      %v2739 = vmul.f32 %v2608, %v2608
      %v2740 = vmul.f32 %v2609, %v2609
      %v2741 = vmul.f32 %v2610, %v2610
      %v2742 = vsel %vm2678, %v2710, 0.0
      %v2743 = vsel %vm2679, %v2711, 0.0
      %v2744 = vsel %vm2680, %v2712, 0.0
      %v2745 = vsel %vm2681, %v2713, 0.0
      %v2746 = vsel %vm2682, %v2714, 0.0
      %v2747 = vsel %vm2683, %v2715, 0.0
      %v2748 = vsel %vm2684, %v2716, 0.0
      %v2749 = vsel %vm2685, %v2717, 0.0
      %v2750 = vsel %vm2686, %v2718, 0.0
      %v2751 = vsel %vm2687, %v2719, 0.0
      %v2752 = vsel %vm2688, %v2720, 0.0
      %v2753 = vsel %vm2689, %v2721, 0.0
      %v2754 = vsel %vm2690, %v2722, 0.0
      %v2755 = vsel %vm2691, %v2723, 0.0
      %v2756 = vsel %vm2692, %v2724, 0.0
      %v2757 = vsel %vm2693, %v2725, 0.0
      %v2758 = vsel %vm2694, %v2726, 0.0
      %v2759 = vsel %vm2695, %v2727, 0.0
      %v2760 = vsel %vm2696, %v2728, 0.0
      %v2761 = vsel %vm2697, %v2729, 0.0
      %v2762 = vsel %vm2698, %v2730, 0.0
      %v2763 = vsel %vm2699, %v2731, 0.0
      %v2764 = vsel %vm2700, %v2732, 0.0
      %v2765 = vsel %vm2701, %v2733, 0.0
      %v2766 = vsel %vm2702, %v2734, 0.0
      %v2767 = vsel %vm2703, %v2735, 0.0
      %v2768 = vsel %vm2704, %v2736, 0.0
      %v2769 = vsel %vm2705, %v2737, 0.0
      %v2770 = vsel %vm2706, %v2738, 0.0
      %v2771 = vsel %vm2707, %v2739, 0.0
      %v2772 = vsel %vm2708, %v2740, 0.0
      %v2773 = vsel %vm2709, %v2741, 0.0
      %vm2774 = vcmask 7168
      %v2775 = vsel %vm2774, %v2742, 0.0
      %v2776 = vsel %vm2774, %v2743, 0.0
      %v2777 = vadd.f32 %v2775, %v2776
      %v2778 = vsel %vm2774, %v2744, 0.0
      %v2779 = vadd.f32 %v2777, %v2778
      %v2780 = vsel %vm2774, %v2745, 0.0
      %v2781 = vadd.f32 %v2779, %v2780
      %v2782 = vsel %vm2774, %v2746, 0.0
      %v2783 = vadd.f32 %v2781, %v2782
      %v2784 = vsel %vm2774, %v2747, 0.0
      %v2785 = vadd.f32 %v2783, %v2784
      %v2786 = vsel %vm2774, %v2748, 0.0
      %v2787 = vadd.f32 %v2785, %v2786
      %v2788 = vsel %vm2774, %v2749, 0.0
      %v2789 = vadd.f32 %v2787, %v2788
      %v2790 = vsel %vm2774, %v2750, 0.0
      %v2791 = vadd.f32 %v2789, %v2790
      %v2792 = vsel %vm2774, %v2751, 0.0
      %v2793 = vadd.f32 %v2791, %v2792
      %v2794 = vsel %vm2774, %v2752, 0.0
      %v2795 = vadd.f32 %v2793, %v2794
      %v2796 = vsel %vm2774, %v2753, 0.0
      %v2797 = vadd.f32 %v2795, %v2796
      %v2798 = vsel %vm2774, %v2754, 0.0
      %v2799 = vadd.f32 %v2797, %v2798
      %v2800 = vsel %vm2774, %v2755, 0.0
      %v2801 = vadd.f32 %v2799, %v2800
      %v2802 = vsel %vm2774, %v2756, 0.0
      %v2803 = vadd.f32 %v2801, %v2802
      %v2804 = vsel %vm2774, %v2757, 0.0
      %v2805 = vadd.f32 %v2803, %v2804
      %v2806 = vsel %vm2774, %v2758, 0.0
      %v2807 = vadd.f32 %v2805, %v2806
      %v2808 = vsel %vm2774, %v2759, 0.0
      %v2809 = vadd.f32 %v2807, %v2808
      %v2810 = vsel %vm2774, %v2760, 0.0
      %v2811 = vadd.f32 %v2809, %v2810
      %v2812 = vsel %vm2774, %v2761, 0.0
      %v2813 = vadd.f32 %v2811, %v2812
      %v2814 = vsel %vm2774, %v2762, 0.0
      %v2815 = vadd.f32 %v2813, %v2814
      %v2816 = vsel %vm2774, %v2763, 0.0
      %v2817 = vadd.f32 %v2815, %v2816
      %v2818 = vsel %vm2774, %v2764, 0.0
      %v2819 = vadd.f32 %v2817, %v2818
      %v2820 = vsel %vm2774, %v2765, 0.0
      %v2821 = vadd.f32 %v2819, %v2820
      %v2822 = vsel %vm2774, %v2766, 0.0
      %v2823 = vadd.f32 %v2821, %v2822
      %v2824 = vsel %vm2774, %v2767, 0.0
      %v2825 = vadd.f32 %v2823, %v2824
      %v2826 = vsel %vm2774, %v2768, 0.0
      %v2827 = vadd.f32 %v2825, %v2826
      %v2828 = vsel %vm2774, %v2769, 0.0
      %v2829 = vadd.f32 %v2827, %v2828
      %v2830 = vsel %vm2774, %v2770, 0.0
      %v2831 = vadd.f32 %v2829, %v2830
      %v2832 = vsel %vm2774, %v2771, 0.0
      %v2833 = vadd.f32 %v2831, %v2832
      %v2834 = vsel %vm2774, %v2772, 0.0
      %v2835 = vadd.f32 %v2833, %v2834
      %v2836 = vsel %vm2774, %v2773, 0.0
      %v2837 = vadd.f32 %v2835, %v2836
      %2838 = vadd.xlane.f32.xlu0 %v2837
      %v2839 = vpop.xlane.xlu0 %2838
      %v2840 = vrot.slane %v2839, 4
      %v2841 = vadd.f32 %v2839, %v2840
      %v2842 = vrot.slane %v2841, 2
      %v2843 = vadd.f32 %v2841, %v2842
      %v2844 = vrot.slane %v2843, 1
      %v2845 = vadd.f32 %v2843, %v2844
      %s2846 = vtos %v2845
      %v2847 = vstv %s2846
      %vm2848 = vcmask 0
      %2849 = vst.msk [vmem:[%s474] sm:$0x1] %vm2848, %v2847
      %s2850 = smul.u32 32, %s25
      %p2851 = scmp.lt.s32.totalorder %s2850, 63
      %s2852 = scalar_select %p2851, %s2850, 63
      %s2853 = smul.addr %s2852, 8
      %s2854 = scalar_lea.vmem %s12, %s2853
      %p2855 = scmp.lt.s32.totalorder %s25, 1
      %s2856 = scalar_select %p2855, %s25, 1
      %s2857 = scalar_lea.vmem %s13, %s2856
      // Predicated region
      $region69: #{mlp_net_forward.1} parent=67 // pred_check
        %p2858 = pneg %p305
      $region70: #{mlp_net_forward.1} parent=67 // pred_check_branch
        %2860 = sbr.rel (%p2858) target = $region72
      $region71: #{mlp_net_forward.1} parent=67 // pred_region
        %s2861 = smul.u32 32, %s25
      $region72: #{mlp_net_forward.1} parent=67 // pred_fallthru
        _
      // Predicated region
      $region73: #{mlp_net_forward.1} parent=67 // pred_check
        %p2862 = pneg %p331
      $region74: #{mlp_net_forward.1} parent=67 // pred_check_branch
        %2864 = sbr.rel (%p2862) target = $region76
      $region75: #{mlp_net_forward.1} parent=67 // pred_region
        _
      $region76: #{mlp_net_forward.1} parent=67 // pred_fallthru
        _
    $region68: #{mlp_net_forward.1} parent=5 // pred_fallthru
      _
    %p2865 = scmp.le.s32.totalorder 2, %s20
    // Predicated region
    $region77: #{mlp_net_forward.1} parent=5 // pred_check
      %p2866 = pneg %p2865
    $region78: #{mlp_net_forward.1} parent=5 // pred_check_branch
      %2868 = sbr.rel (%p2866) target = $region80
    $region79: #{mlp_net_forward.1} parent=5 // pred_region
      %s2869 = ssub.s32 %s20, 2
      // Predicated region
      $region81: #{mlp_net_forward.1} parent=79 // pred_check
        %p2870 = pneg %p311
      $region82: #{mlp_net_forward.1} parent=79 // pred_check_branch
        %2872 = sbr.rel (%p2870) target = $region84
      $region83: #{mlp_net_forward.1} parent=79 // pred_region
        %s2873 = smul.u32 32, %s26
        %p2874 = scmp.lt.s32.totalorder %s2873, 63
        %s2875 = scalar_select %p2874, %s2873, 63
        %s2876 = smul.addr %s2875, 8
        %s2877 = scalar_lea.vmem %s12, %s2876
      $region84: #{mlp_net_forward.1} parent=79 // pred_fallthru
        _
      // Predicated region
      $region85: #{mlp_net_forward.1} parent=79 // pred_check
        %p2878 = pneg %p337
      $region86: #{mlp_net_forward.1} parent=79 // pred_check_branch
        %2880 = sbr.rel (%p2878) target = $region88
      $region87: #{mlp_net_forward.1} parent=79 // pred_region
        %p2881 = scmp.lt.s32.totalorder %s26, 1
        %s2882 = scalar_select %p2881, %s26, 1
        %s2883 = scalar_lea.vmem %s13, %s2882
      $region88: #{mlp_net_forward.1} parent=79 // pred_fallthru
        _
    $region80: #{mlp_net_forward.1} parent=5 // pred_fallthru
      _
  $region6: #{mlp_net_forward.1} parent=0 // loop_footer
    %s24 = sadd.s32 1, %s20
  $region7: #{mlp_net_forward.1} parent=0 // loop_footer_branch
    %19 = sbr.rel target = $region3
  $region8: #{mlp_net_forward.1} parent=0 // loop_exit
    _

</llo_original>
